<compile_context>
chip_gen: v7x
topology: tpu7x:2x2x1
jax: 0.10.0
libtpu: 0.0.40
codegen_flags: <defaults>
</compile_context>

<pallas_src>
import math
import functools

import jax
import jax.numpy as jnp
from jax.experimental import pallas as pl
from jax.experimental.pallas import tpu as pltpu


# ------------------------------ kernel helpers ------------------------------

def _layer_norm(x, a, b, eps=1e-6):
    # Matches the PyTorch module exactly: torch.std uses Bessel's correction
    # (N-1) and the denominator is (std + eps), not sqrt(var + eps).
    # Exact division (LN is not the bottleneck and multiplies onto the output).
    d = x.shape[-1]
    mean = jnp.mean(x, axis=-1, keepdims=True)
    centered = x - mean
    var = jnp.sum(centered * centered, axis=-1, keepdims=True) * (1.0 / (d - 1))
    std = jnp.sqrt(var)
    return a * centered / (std + eps) + b


def _softmax(x):
    m = jnp.max(x, axis=-1, keepdims=True)
    e = jnp.exp(x - m)
    # EUP approx reciprocal only here (softmax denominator).
    return e * pl.reciprocal(jnp.sum(e, axis=-1, keepdims=True), approx=True)


# ------------------------------ the kernel ----------------------------------

def encoder_kernel(n_heads, seq_len, qkv_fused, *refs):
    bf16 = jnp.bfloat16
    x_ref = refs[0]
    o_ref = refs[-1]
    w = refs[1:-1]
    if qkv_fused:
        (wqkv_ref, bqkv_ref, wo_ref, bo_ref,
         ln1a_ref, ln1b_ref, w1_ref, b1_ref, w2_ref, b2_ref,
         ln2a_ref, ln2b_ref, lnfa_ref, lnfb_ref) = w
    else:
        (wq_ref, bq_ref, wk_ref, bk_ref, wv_ref, bv_ref, wo_ref, bo_ref,
         ln1a_ref, ln1b_ref, w1_ref, b1_ref, w2_ref, b2_ref,
         ln2a_ref, ln2b_ref, lnfa_ref, lnfb_ref) = w

    M, D = x_ref.shape                 # (bb*S, D): batch folded into matmul M
    S = seq_len
    bb = M // S
    H = n_heads
    d_k = D // H

    x = x_ref[...]                     # f32 activations

    # Read each small param exactly once (JAX does not CSE broadcasts).
    ln1a, ln1b = ln1a_ref[...], ln1b_ref[...]
    ln2a, ln2b = ln2a_ref[...], ln2b_ref[...]
    lnfa, lnfb = lnfa_ref[...], lnfb_ref[...]
    bo, b1, b2 = bo_ref[...], b1_ref[...], b2_ref[...]

    # ---- sublayer connection 0: x + self_attn(LN(x)) ----
    # (1/sqrt(d_k) is pre-folded into the Q projection, so no score scaling.)
    xn = _layer_norm(x, ln1a, ln1b).astype(bf16)
    if qkv_fused:
        # D % 128 == 0: one (D, 3D) matmul; slices land on 128-lane boundaries.
        qkv = jnp.dot(xn, wqkv_ref[...],
                      preferred_element_type=jnp.float32) + bqkv_ref[...]
        q = qkv[:, 0:D]
        k = qkv[:, D:2 * D]
        v = qkv[:, 2 * D:3 * D]
    else:
        # D % 128 != 0: separate projections -> never slice inside a vreg.
        q = jnp.dot(xn, wq_ref[...], preferred_element_type=jnp.float32) + bq_ref[...]
        k = jnp.dot(xn, wk_ref[...], preferred_element_type=jnp.float32) + bk_ref[...]
        v = jnp.dot(xn, wv_ref[...], preferred_element_type=jnp.float32) + bv_ref[...]

    if H == 1:
        q3 = q.reshape(bb, S, D)
        k3 = k.reshape(bb, S, D)
        v3 = v.reshape(bb, S, D)
    else:
        # TODO(synk): for n_heads > 1, use a head-major layout (grid/fori_loop
        #             over heads) instead of XLU transpose copies.
        def to_heads(t):
            return (t.reshape(bb, S, H, d_k)
                     .transpose(0, 2, 1, 3)
                     .reshape(bb * H, S, d_k))
        q3, k3, v3 = to_heads(q), to_heads(k), to_heads(v)

    # TODO(synk): flash-style KV tiling for large S (see file header).
    s = jnp.einsum('bqd,bkd->bqk', q3.astype(bf16), k3.astype(bf16),
                   preferred_element_type=jnp.float32)            # (bH, S, S)
    p = _softmax(s)                                                # f32
    o = jnp.einsum('bqk,bkd->bqd', p.astype(bf16), v3.astype(bf16),
                   preferred_element_type=jnp.float32)             # (bH, S, dk)

    if H == 1:
        attn = o.reshape(M, D)
    else:
        attn = (o.reshape(bb, H, S, d_k)
                 .transpose(0, 2, 1, 3)
                 .reshape(M, D))

    attn = jnp.dot(attn.astype(bf16), wo_ref[...],
                   preferred_element_type=jnp.float32) + bo
    x = x + attn                                                   # residual

    # ---- sublayer connection 1: x + FFN(LN(x)) ----
    xn2 = _layer_norm(x, ln2a, ln2b).astype(bf16)
    h1 = jnp.dot(xn2, w1_ref[...], preferred_element_type=jnp.float32) + b1
    h1 = jnp.maximum(h1, 0.0)
    ff = jnp.dot(h1.astype(bf16), w2_ref[...],
                 preferred_element_type=jnp.float32) + b2
    x = x + ff                                                     # residual

    # ---- final encoder LayerNorm ----
    o_ref[...] = _layer_norm(x, lnfa, lnfb)


# ------------------------------ hardware queries ------------------------------

def _num_tensorcores():
    # v7x has 2 TensorCores per chip; v5e / v6e have 1.
    try:
        kind = jax.devices()[0].device_kind.lower()
    except Exception:
        return 1
    return 2 if "v7" in kind else 1


def _vmem_limit_bytes():
    # Derive the scoped VMEM budget from the hardware instead of hardcoding:
    # ~8 MiB headroom for compiler scratch, capped at 100 MiB (v5e/v6e have
    # 128 MiB physical; v7x only 64 MiB per TensorCore).
    try:
        cap = int(pltpu.get_tpu_info().vmem_capacity_bytes)
    except Exception:
        cap = 64 * 1024 * 1024          # conservative (v7x per-TC size)
    return max(32 * 1024 * 1024, min(cap - 8 * 1024 * 1024, 100 * 1024 * 1024))


# ------------------------------ weight preparation ---------------------------

def prepare_encoder_weights(params, n_heads=1):
    """One-time weight prep: bf16 casts, conditional QKV fusion, and folding
    the 1/sqrt(d_k) attention scale into the Q projection.  Hoisted out of the
    per-call wrapper so the concat/convert XLA ops run once."""
    bf16 = jnp.bfloat16
    D = params["wq"].shape[0]
    assert D % n_heads == 0, "n_heads must divide d_model"
    assert D >= 2, "LayerNorm with Bessel correction needs d_model >= 2"
    d_k = D // n_heads
    scale = 1.0 / math.sqrt(d_k)

    wq = params["wq"] * scale
    bq = params["bq"] * scale

    qkv_fused = (D % 128 == 0)
    if qkv_fused:
        proj = [jnp.concatenate([wq, params["wk"], params["wv"]],
                                axis=1).astype(bf16),                  # (D, 3D)
                jnp.concatenate([bq, params["bk"], params["bv"]],
                                axis=1).astype(jnp.float32)]           # (1, 3D)
    else:
        proj = [wq.astype(bf16), bq.astype(jnp.float32),
                params["wk"].astype(bf16), params["bk"],
                params["wv"].astype(bf16), params["bv"]]

    weights = proj + [
        params["wo"].astype(bf16), params["bo"],
        params["ln1a"], params["ln1b"],
        params["w1"].astype(bf16), params["b1"],
        params["w2"].astype(bf16), params["b2"],
        params["ln2a"], params["ln2b"],
        params["lnfa"], params["lnfb"],
    ]
    return qkv_fused, weights


# ------------------------------ wrapper --------------------------------------

def transformer_encoder(token_ids, params, prepared=None, *, n_heads=1):
    if prepared is None:
        prepared = prepare_encoder_weights(params, n_heads=n_heads)
    qkv_fused, weights = prepared

    # Glue: embedding lookup + positional encoding (dropout = identity).
    emb = params["embedding"][token_ids]              # (B, S, D)
    B, S, D = emb.shape
    d_ff = params["w1"].shape[1]
    x = (emb + params["pe"][:S][None]).astype(jnp.float32)

    # 2D (B*S, D) slab: batch+sequence folded into the matmul M dimension,
    # 2D BlockSpec -> no reshapes in the kernel's matmul path.
    x2 = x.reshape(B * S, D)

    # Grid: split the batch only when there is real hardware parallelism
    # (v7x's 2 TensorCores). On single-TC chips the grid is a sequential loop,
    # so keep one step and feed the MXU the full M.
    n_tc = _num_tensorcores()
    grid_b = 2 if (n_tc >= 2 and B >= 2 and B % 2 == 0) else 1
    bm = (B // grid_b) * S                            # rows per grid step
    # TODO(synk): once B is large enough that grid length > 2, consider
    #             pipeline_mode=pl.Buffered(3) on the x BlockSpec.

    in_specs = [pl.BlockSpec((bm, D), lambda i: (i, 0))]
    # Weights: constant across the grid -> untiled VMEM residents (no
    # per-step DMA, no double-buffer duplication).
    in_specs += [pl.BlockSpec(memory_space=pltpu.MemorySpace.VMEM)
                 for _ in weights]
    out_spec = pl.BlockSpec((bm, D), lambda i: (i, 0))

    # Advisory cost estimate (6 matmul-equivalents + softmax exp).
    matmul_flops = 2 * B * S * (D * 3 * D            # QKV projections
                                + S * D              # Q @ K^T
                                + S * D              # P @ V
                                + D * D              # output projection
                                + D * d_ff           # FFN up
                                + d_ff * D)          # FFN down
    transcendentals = B * n_heads * S * S            # exp in softmax
    bytes_accessed = (2 * B * S * D * 4
                      + sum(int(w.size) * w.dtype.itemsize for w in weights))
    cost = pl.CostEstimate(flops=int(matmul_flops),
                           transcendentals=int(transcendentals),
                           bytes_accessed=int(bytes_accessed))

    kernel = functools.partial(encoder_kernel, n_heads, S, qkv_fused)
    out2 = pl.pallas_call(
        kernel,
        out_shape=jax.ShapeDtypeStruct((B * S, D), jnp.float32),
        grid=(grid_b,),
        in_specs=in_specs,
        out_specs=out_spec,
        compiler_params=pltpu.CompilerParams(
            dimension_semantics=("parallel",),
            vmem_limit_bytes=_vmem_limit_bytes()),
        cost_estimate=cost,
    )(x2, *weights)
    return out2.reshape(B, S, D)


# ------------------------------ parameters -----------------------------------

def make_params(key, d_model, d_ff, vocab=30000, max_len=500):
    def xavier(k, shape):
        fan_in, fan_out = shape[0], shape[1]
        lim = math.sqrt(6.0 / (fan_in + fan_out))
        return jax.random.uniform(k, shape, jnp.float32, -lim, lim)

    ks = jax.random.split(key, 8)
    params = {
        "embedding": xavier(ks[0], (vocab, d_model)),
        "wq": xavier(ks[1], (d_model, d_model)),
        "wk": xavier(ks[2], (d_model, d_model)),
        "wv": xavier(ks[3], (d_model, d_model)),
        "wo": xavier(ks[4], (d_model, d_model)),
        "w1": xavier(ks[5], (d_model, d_ff)),
        "w2": xavier(ks[6], (d_ff, d_model)),
        "bq": jnp.zeros((1, d_model), jnp.float32),
        "bk": jnp.zeros((1, d_model), jnp.float32),
        "bv": jnp.zeros((1, d_model), jnp.float32),
        "bo": jnp.zeros((1, d_model), jnp.float32),
        "b1": jnp.zeros((1, d_ff), jnp.float32),
        "b2": jnp.zeros((1, d_model), jnp.float32),
        "ln1a": jnp.ones((1, d_model), jnp.float32),
        "ln1b": jnp.zeros((1, d_model), jnp.float32),
        "ln2a": jnp.ones((1, d_model), jnp.float32),
        "ln2b": jnp.zeros((1, d_model), jnp.float32),
        "lnfa": jnp.ones((1, d_model), jnp.float32),
        "lnfb": jnp.zeros((1, d_model), jnp.float32),
    }
    # PositionalEncoding buffer, computed exactly as in the PyTorch module.
    position = jnp.arange(max_len, dtype=jnp.float32)[:, None]
    div_term = jnp.exp(jnp.arange(0, d_model, 2, dtype=jnp.float32)
                       * -(math.log(10000.0) / d_model))
    pe = jnp.zeros((max_len, d_model), jnp.float32)
    pe = pe.at[:, 0::2].set(jnp.sin(position * div_term))
    pe = pe.at[:, 1::2].set(jnp.cos(position * div_term))
    params["pe"] = pe
    return params


# ------------------------------ pure-JAX reference ---------------------------

def reference(token_ids, p, n_heads=1):
    emb = p["embedding"][token_ids]
    S = emb.shape[1]
    x = emb + p["pe"][:S][None]
    D = x.shape[-1]
    d_k = D // n_heads

    def ln(x, a, b, eps=1e-6):
        mean = x.mean(-1, keepdims=True)
        var = ((x - mean) ** 2).sum(-1, keepdims=True) / (x.shape[-1] - 1)
        return a * (x - mean) / (jnp.sqrt(var) + eps) + b

    xn = ln(x, p["ln1a"], p["ln1b"])
    q = xn @ p["wq"] + p["bq"]
    k = xn @ p["wk"] + p["bk"]
    v = xn @ p["wv"] + p["bv"]
    B, S, _ = q.shape
    qh = q.reshape(B, S, n_heads, d_k).transpose(0, 2, 1, 3)
    kh = k.reshape(B, S, n_heads, d_k).transpose(0, 2, 1, 3)
    vh = v.reshape(B, S, n_heads, d_k).transpose(0, 2, 1, 3)
    s = jnp.einsum("bhqd,bhkd->bhqk", qh, kh) / math.sqrt(d_k)
    patt = jax.nn.softmax(s, axis=-1)
    o = jnp.einsum("bhqk,bhkd->bhqd", patt, vh)
    o = o.transpose(0, 2, 1, 3).reshape(B, S, D)
    x = x + (o @ p["wo"] + p["bo"])
    xn2 = ln(x, p["ln2a"], p["ln2b"])
    ff = jnp.maximum(xn2 @ p["w1"] + p["b1"], 0.0) @ p["w2"] + p["b2"]
    x = x + ff
    return ln(x, p["lnfa"], p["lnfb"])


# ------------------------------ main ------------------------------------------

if __name__ == "__main__":
    B, S = 2, 8
    d_model, d_ff, n_heads = 32, 64, 1   # n_layers=1 (module default)

    key = jax.random.PRNGKey(0)
    k_tok, k_par = jax.random.split(key)
    token_ids = jax.random.randint(k_tok, (B, S), 0, 30000, dtype=jnp.int32)
    params = make_params(k_par, d_model, d_ff)

    # Weight prep runs once (hoisted out of the per-call wrapper).
    prepared = prepare_encoder_weights(params, n_heads=n_heads)

    out = transformer_encoder(token_ids, params, prepared, n_heads=n_heads)
    out = jax.block_until_ready(out)

    ref = jax.block_until_ready(reference(token_ids, params, n_heads=n_heads))
    assert out.shape == (B, S, d_model)
    # bf16 MXU operands with f32 accumulation: slightly looser tolerance.
    assert jnp.allclose(out, ref, atol=3e-2, rtol=3e-2), "mismatch vs reference"

    print("KERNEL_OK")
</pallas_src>

<mosaic_0001>
module attributes {stable_mosaic.version = 11 : i64} {
  func.func @encoder_kernel(%arg0: i32, %arg1: memref<16x32xf32, #tpu.memory_space<vmem>>, %arg2: memref<32x32xbf16, #tpu.memory_space<vmem>>, %arg3: memref<1x32xf32, #tpu.memory_space<vmem>>, %arg4: memref<32x32xbf16, #tpu.memory_space<vmem>>, %arg5: memref<1x32xf32, #tpu.memory_space<vmem>>, %arg6: memref<32x32xbf16, #tpu.memory_space<vmem>>, %arg7: memref<1x32xf32, #tpu.memory_space<vmem>>, %arg8: memref<32x32xbf16, #tpu.memory_space<vmem>>, %arg9: memref<1x32xf32, #tpu.memory_space<vmem>>, %arg10: memref<1x32xf32, #tpu.memory_space<vmem>>, %arg11: memref<1x32xf32, #tpu.memory_space<vmem>>, %arg12: memref<32x64xbf16, #tpu.memory_space<vmem>>, %arg13: memref<1x64xf32, #tpu.memory_space<vmem>>, %arg14: memref<64x32xbf16, #tpu.memory_space<vmem>>, %arg15: memref<1x32xf32, #tpu.memory_space<vmem>>, %arg16: memref<1x32xf32, #tpu.memory_space<vmem>>, %arg17: memref<1x32xf32, #tpu.memory_space<vmem>>, %arg18: memref<1x32xf32, #tpu.memory_space<vmem>>, %arg19: memref<1x32xf32, #tpu.memory_space<vmem>>, %arg20: memref<16x32xf32, #tpu.memory_space<vmem>>) attributes {dimension_semantics = [#tpu.dimension_semantics<parallel>], iteration_bounds = array<i64: 1>, scalar_prefetch = 0 : i64, scratch_operands = 0 : i64, tpu.core_type = #tpu.core_type<tc>, window_params = [{transform_indices = @transform_0, window_bounds = array<i64: 16, 32>}, {pipeline_mode = #tpu.pipeline_mode<synchronous>, transform_indices = @transform_1, window_bounds = array<i64: 32, 32>}, {pipeline_mode = #tpu.pipeline_mode<synchronous>, transform_indices = @transform_2, window_bounds = array<i64: 1, 32>}, {pipeline_mode = #tpu.pipeline_mode<synchronous>, transform_indices = @transform_3, window_bounds = array<i64: 32, 32>}, {pipeline_mode = #tpu.pipeline_mode<synchronous>, transform_indices = @transform_4, window_bounds = array<i64: 1, 32>}, {pipeline_mode = #tpu.pipeline_mode<synchronous>, transform_indices = @transform_5, window_bounds = array<i64: 32, 32>}, {pipeline_mode = #tpu.pipeline_mode<synchronous>, transform_indices = @transform_6, window_bounds = array<i64: 1, 32>}, {pipeline_mode = #tpu.pipeline_mode<synchronous>, transform_indices = @transform_7, window_bounds = array<i64: 32, 32>}, {pipeline_mode = #tpu.pipeline_mode<synchronous>, transform_indices = @transform_8, window_bounds = array<i64: 1, 32>}, {pipeline_mode = #tpu.pipeline_mode<synchronous>, transform_indices = @transform_9, window_bounds = array<i64: 1, 32>}, {pipeline_mode = #tpu.pipeline_mode<synchronous>, transform_indices = @transform_10, window_bounds = array<i64: 1, 32>}, {pipeline_mode = #tpu.pipeline_mode<synchronous>, transform_indices = @transform_11, window_bounds = array<i64: 32, 64>}, {pipeline_mode = #tpu.pipeline_mode<synchronous>, transform_indices = @transform_12, window_bounds = array<i64: 1, 64>}, {pipeline_mode = #tpu.pipeline_mode<synchronous>, transform_indices = @transform_13, window_bounds = array<i64: 64, 32>}, {pipeline_mode = #tpu.pipeline_mode<synchronous>, transform_indices = @transform_14, window_bounds = array<i64: 1, 32>}, {pipeline_mode = #tpu.pipeline_mode<synchronous>, transform_indices = @transform_15, window_bounds = array<i64: 1, 32>}, {pipeline_mode = #tpu.pipeline_mode<synchronous>, transform_indices = @transform_16, window_bounds = array<i64: 1, 32>}, {pipeline_mode = #tpu.pipeline_mode<synchronous>, transform_indices = @transform_17, window_bounds = array<i64: 1, 32>}, {pipeline_mode = #tpu.pipeline_mode<synchronous>, transform_indices = @transform_18, window_bounds = array<i64: 1, 32>}, {transform_indices = @transform_19, window_bounds = array<i64: 16, 32>}]} {
    %c0 = arith.constant 0 : index
    %c0_0 = arith.constant 0 : index
    %0 = vector.load %arg1[%c0, %c0_0] : memref<16x32xf32, #tpu.memory_space<vmem>>, vector<16x32xf32>
    %c0_1 = arith.constant 0 : index
    %c0_2 = arith.constant 0 : index
    %1 = vector.load %arg10[%c0_1, %c0_2] : memref<1x32xf32, #tpu.memory_space<vmem>>, vector<1x32xf32>
    %c0_3 = arith.constant 0 : index
    %c0_4 = arith.constant 0 : index
    %2 = vector.load %arg11[%c0_3, %c0_4] : memref<1x32xf32, #tpu.memory_space<vmem>>, vector<1x32xf32>
    %c0_5 = arith.constant 0 : index
    %c0_6 = arith.constant 0 : index
    %3 = vector.load %arg16[%c0_5, %c0_6] : memref<1x32xf32, #tpu.memory_space<vmem>>, vector<1x32xf32>
    %c0_7 = arith.constant 0 : index
    %c0_8 = arith.constant 0 : index
    %4 = vector.load %arg17[%c0_7, %c0_8] : memref<1x32xf32, #tpu.memory_space<vmem>>, vector<1x32xf32>
    %c0_9 = arith.constant 0 : index
    %c0_10 = arith.constant 0 : index
    %5 = vector.load %arg18[%c0_9, %c0_10] : memref<1x32xf32, #tpu.memory_space<vmem>>, vector<1x32xf32>
    %c0_11 = arith.constant 0 : index
    %c0_12 = arith.constant 0 : index
    %6 = vector.load %arg19[%c0_11, %c0_12] : memref<1x32xf32, #tpu.memory_space<vmem>>, vector<1x32xf32>
    %c0_13 = arith.constant 0 : index
    %c0_14 = arith.constant 0 : index
    %7 = vector.load %arg9[%c0_13, %c0_14] : memref<1x32xf32, #tpu.memory_space<vmem>>, vector<1x32xf32>
    %c0_15 = arith.constant 0 : index
    %c0_16 = arith.constant 0 : index
    %8 = vector.load %arg13[%c0_15, %c0_16] : memref<1x64xf32, #tpu.memory_space<vmem>>, vector<1x64xf32>
    %c0_17 = arith.constant 0 : index
    %c0_18 = arith.constant 0 : index
    %9 = vector.load %arg15[%c0_17, %c0_18] : memref<1x32xf32, #tpu.memory_space<vmem>>, vector<1x32xf32>
    %cst = arith.constant dense<0.000000e+00> : vector<16xf32>
    %10 = vector.multi_reduction <add>, %0, %cst [1] : vector<16x32xf32> to vector<16xf32>
    %11 = vector.shape_cast %10 : vector<16xf32> to vector<16x1xf32>
    %cst_19 = arith.constant 3.200000e+01 : f32
    %12 = vector.broadcast %cst_19 : f32 to vector<16x1xf32>
    %13 = arith.divf %11, %12 : vector<16x1xf32>
    %14 = vector.broadcast %13 : vector<16x1xf32> to vector<16x32xf32>
    %15 = arith.subf %0, %14 : vector<16x32xf32>
    %16 = arith.mulf %15, %15 : vector<16x32xf32>
    %cst_20 = arith.constant dense<0.000000e+00> : vector<16xf32>
    %17 = vector.multi_reduction <add>, %16, %cst_20 [1] : vector<16x32xf32> to vector<16xf32>
    %18 = vector.shape_cast %17 : vector<16xf32> to vector<16x1xf32>
    %cst_21 = arith.constant 0.0322580636 : f32
    %19 = vector.broadcast %cst_21 : f32 to vector<16x1xf32>
    %20 = arith.mulf %18, %19 : vector<16x1xf32>
    %21 = math.sqrt %20 : vector<16x1xf32>
    %22 = vector.broadcast %1 : vector<1x32xf32> to vector<16x32xf32>
    %23 = arith.mulf %22, %15 : vector<16x32xf32>
    %cst_22 = arith.constant 9.99999997E-7 : f32
    %24 = vector.broadcast %cst_22 : f32 to vector<16x1xf32>
    %25 = arith.addf %21, %24 : vector<16x1xf32>
    %26 = vector.broadcast %25 : vector<16x1xf32> to vector<16x32xf32>
    %27 = arith.divf %23, %26 : vector<16x32xf32>
    %28 = vector.broadcast %2 : vector<1x32xf32> to vector<16x32xf32>
    %29 = arith.addf %27, %28 : vector<16x32xf32>
    %30 = arith.truncf %29 : vector<16x32xf32> to vector<16x32xbf16>
    %c0_23 = arith.constant 0 : index
    %c0_24 = arith.constant 0 : index
    %31 = vector.load %arg2[%c0_23, %c0_24] : memref<32x32xbf16, #tpu.memory_space<vmem>>, vector<32x32xbf16>
    %cst_25 = arith.constant dense<0.000000e+00> : vector<16x32xf32>
    %32 = tpu.matmul %30, %31, %cst_25 {dimension_numbers = #tpu.dot_dimension_numbers<[1], [0], [0], [1], [0, 0, 1, 1], [], []>} : vector<16x32xbf16>, vector<32x32xbf16>, vector<16x32xf32> -> vector<16x32xf32>
    %c0_26 = arith.constant 0 : index
    %c0_27 = arith.constant 0 : index
    %33 = vector.load %arg3[%c0_26, %c0_27] : memref<1x32xf32, #tpu.memory_space<vmem>>, vector<1x32xf32>
    %34 = vector.broadcast %33 : vector<1x32xf32> to vector<16x32xf32>
    %35 = arith.addf %32, %34 : vector<16x32xf32>
    %c0_28 = arith.constant 0 : index
    %c0_29 = arith.constant 0 : index
    %36 = vector.load %arg4[%c0_28, %c0_29] : memref<32x32xbf16, #tpu.memory_space<vmem>>, vector<32x32xbf16>
    %cst_30 = arith.constant dense<0.000000e+00> : vector<16x32xf32>
    %37 = tpu.matmul %30, %36, %cst_30 {dimension_numbers = #tpu.dot_dimension_numbers<[1], [0], [0], [1], [0, 0, 1, 1], [], []>} : vector<16x32xbf16>, vector<32x32xbf16>, vector<16x32xf32> -> vector<16x32xf32>
    %c0_31 = arith.constant 0 : index
    %c0_32 = arith.constant 0 : index
    %38 = vector.load %arg5[%c0_31, %c0_32] : memref<1x32xf32, #tpu.memory_space<vmem>>, vector<1x32xf32>
    %39 = vector.broadcast %38 : vector<1x32xf32> to vector<16x32xf32>
    %40 = arith.addf %37, %39 : vector<16x32xf32>
    %c0_33 = arith.constant 0 : index
    %c0_34 = arith.constant 0 : index
    %41 = vector.load %arg6[%c0_33, %c0_34] : memref<32x32xbf16, #tpu.memory_space<vmem>>, vector<32x32xbf16>
    %cst_35 = arith.constant dense<0.000000e+00> : vector<16x32xf32>
    %42 = tpu.matmul %30, %41, %cst_35 {dimension_numbers = #tpu.dot_dimension_numbers<[1], [0], [0], [1], [0, 0, 1, 1], [], []>} : vector<16x32xbf16>, vector<32x32xbf16>, vector<16x32xf32> -> vector<16x32xf32>
    %c0_36 = arith.constant 0 : index
    %c0_37 = arith.constant 0 : index
    %43 = vector.load %arg7[%c0_36, %c0_37] : memref<1x32xf32, #tpu.memory_space<vmem>>, vector<1x32xf32>
    %44 = vector.broadcast %43 : vector<1x32xf32> to vector<16x32xf32>
    %45 = arith.addf %42, %44 : vector<16x32xf32>
    %46 = vector.shape_cast %35 : vector<16x32xf32> to vector<2x8x32xf32>
    %47 = vector.shape_cast %40 : vector<16x32xf32> to vector<2x8x32xf32>
    %48 = vector.shape_cast %45 : vector<16x32xf32> to vector<2x8x32xf32>
    %49 = arith.truncf %46 : vector<2x8x32xf32> to vector<2x8x32xbf16>
    %50 = arith.truncf %47 : vector<2x8x32xf32> to vector<2x8x32xbf16>
    "tpu.trace_start"() <{level = 10 : i32, message = "bqd,bkd->bqk"}> : () -> ()
    %cst_38 = arith.constant dense<0.000000e+00> : vector<2x8x8xf32>
    %51 = tpu.matmul %49, %50, %cst_38 {dimension_numbers = #tpu.dot_dimension_numbers<[2], [2], [1], [1], [0, 0, 0, 1, 1, 1], [0], [0]>} : vector<2x8x32xbf16>, vector<2x8x32xbf16>, vector<2x8x8xf32> -> vector<2x8x8xf32>
    "tpu.trace_stop"() : () -> ()
    %cst_39 = arith.constant dense<0xFF800000> : vector<2x8xf32>
    %52 = vector.multi_reduction <maximumf>, %51, %cst_39 [2] : vector<2x8x8xf32> to vector<2x8xf32>
    %53 = vector.shape_cast %52 : vector<2x8xf32> to vector<2x8x1xf32>
    %54 = vector.broadcast %53 : vector<2x8x1xf32> to vector<2x8x8xf32>
    %55 = arith.subf %51, %54 : vector<2x8x8xf32>
    %56 = math.exp %55 : vector<2x8x8xf32>
    %cst_40 = arith.constant dense<0.000000e+00> : vector<2x8xf32>
    %57 = vector.multi_reduction <add>, %56, %cst_40 [2] : vector<2x8x8xf32> to vector<2x8xf32>
    %58 = vector.shape_cast %57 : vector<2x8xf32> to vector<2x8x1xf32>
    %59 = tpu.reciprocal %58 {approx = true} : vector<2x8x1xf32> -> vector<2x8x1xf32>
    %60 = vector.broadcast %59 : vector<2x8x1xf32> to vector<2x8x8xf32>
    %61 = arith.mulf %56, %60 : vector<2x8x8xf32>
    %62 = arith.truncf %61 : vector<2x8x8xf32> to vector<2x8x8xbf16>
    %63 = arith.truncf %48 : vector<2x8x32xf32> to vector<2x8x32xbf16>
    "tpu.trace_start"() <{level = 10 : i32, message = "bqk,bkd->bqd"}> : () -> ()
    %cst_41 = arith.constant dense<0.000000e+00> : vector<2x8x32xf32>
    %64 = tpu.matmul %62, %63, %cst_41 {dimension_numbers = #tpu.dot_dimension_numbers<[2], [1], [1], [2], [0, 0, 0, 1, 1, 2], [0], [0]>} : vector<2x8x8xbf16>, vector<2x8x32xbf16>, vector<2x8x32xf32> -> vector<2x8x32xf32>
    "tpu.trace_stop"() : () -> ()
    %65 = vector.shape_cast %64 : vector<2x8x32xf32> to vector<16x32xf32>
    %66 = arith.truncf %65 : vector<16x32xf32> to vector<16x32xbf16>
    %c0_42 = arith.constant 0 : index
    %c0_43 = arith.constant 0 : index
    %67 = vector.load %arg8[%c0_42, %c0_43] : memref<32x32xbf16, #tpu.memory_space<vmem>>, vector<32x32xbf16>
    %cst_44 = arith.constant dense<0.000000e+00> : vector<16x32xf32>
    %68 = tpu.matmul %66, %67, %cst_44 {dimension_numbers = #tpu.dot_dimension_numbers<[1], [0], [0], [1], [0, 0, 1, 1], [], []>} : vector<16x32xbf16>, vector<32x32xbf16>, vector<16x32xf32> -> vector<16x32xf32>
    %69 = vector.broadcast %7 : vector<1x32xf32> to vector<16x32xf32>
    %70 = arith.addf %68, %69 : vector<16x32xf32>
    %71 = arith.addf %0, %70 : vector<16x32xf32>
    %cst_45 = arith.constant dense<0.000000e+00> : vector<16xf32>
    %72 = vector.multi_reduction <add>, %71, %cst_45 [1] : vector<16x32xf32> to vector<16xf32>
    %73 = vector.shape_cast %72 : vector<16xf32> to vector<16x1xf32>
    %cst_46 = arith.constant 3.200000e+01 : f32
    %74 = vector.broadcast %cst_46 : f32 to vector<16x1xf32>
    %75 = arith.divf %73, %74 : vector<16x1xf32>
    %76 = vector.broadcast %75 : vector<16x1xf32> to vector<16x32xf32>
    %77 = arith.subf %71, %76 : vector<16x32xf32>
    %78 = arith.mulf %77, %77 : vector<16x32xf32>
    %cst_47 = arith.constant dense<0.000000e+00> : vector<16xf32>
    %79 = vector.multi_reduction <add>, %78, %cst_47 [1] : vector<16x32xf32> to vector<16xf32>
    %80 = vector.shape_cast %79 : vector<16xf32> to vector<16x1xf32>
    %cst_48 = arith.constant 0.0322580636 : f32
    %81 = vector.broadcast %cst_48 : f32 to vector<16x1xf32>
    %82 = arith.mulf %80, %81 : vector<16x1xf32>
    %83 = math.sqrt %82 : vector<16x1xf32>
    %84 = vector.broadcast %3 : vector<1x32xf32> to vector<16x32xf32>
    %85 = arith.mulf %84, %77 : vector<16x32xf32>
    %cst_49 = arith.constant 9.99999997E-7 : f32
    %86 = vector.broadcast %cst_49 : f32 to vector<16x1xf32>
    %87 = arith.addf %83, %86 : vector<16x1xf32>
    %88 = vector.broadcast %87 : vector<16x1xf32> to vector<16x32xf32>
    %89 = arith.divf %85, %88 : vector<16x32xf32>
    %90 = vector.broadcast %4 : vector<1x32xf32> to vector<16x32xf32>
    %91 = arith.addf %89, %90 : vector<16x32xf32>
    %92 = arith.truncf %91 : vector<16x32xf32> to vector<16x32xbf16>
    %c0_50 = arith.constant 0 : index
    %c0_51 = arith.constant 0 : index
    %93 = vector.load %arg12[%c0_50, %c0_51] : memref<32x64xbf16, #tpu.memory_space<vmem>>, vector<32x64xbf16>
    %cst_52 = arith.constant dense<0.000000e+00> : vector<16x64xf32>
    %94 = tpu.matmul %92, %93, %cst_52 {dimension_numbers = #tpu.dot_dimension_numbers<[1], [0], [0], [1], [0, 0, 1, 1], [], []>} : vector<16x32xbf16>, vector<32x64xbf16>, vector<16x64xf32> -> vector<16x64xf32>
    %95 = vector.broadcast %8 : vector<1x64xf32> to vector<16x64xf32>
    %96 = arith.addf %94, %95 : vector<16x64xf32>
    %cst_53 = arith.constant 0.000000e+00 : f32
    %97 = vector.broadcast %cst_53 : f32 to vector<16x64xf32>
    %98 = arith.maximumf %96, %97 : vector<16x64xf32>
    %99 = arith.truncf %98 : vector<16x64xf32> to vector<16x64xbf16>
    %c0_54 = arith.constant 0 : index
    %c0_55 = arith.constant 0 : index
    %100 = vector.load %arg14[%c0_54, %c0_55] : memref<64x32xbf16, #tpu.memory_space<vmem>>, vector<64x32xbf16>
    %cst_56 = arith.constant dense<0.000000e+00> : vector<16x32xf32>
    %101 = tpu.matmul %99, %100, %cst_56 {dimension_numbers = #tpu.dot_dimension_numbers<[1], [0], [0], [1], [0, 0, 1, 1], [], []>} : vector<16x64xbf16>, vector<64x32xbf16>, vector<16x32xf32> -> vector<16x32xf32>
    %102 = vector.broadcast %9 : vector<1x32xf32> to vector<16x32xf32>
    %103 = arith.addf %101, %102 : vector<16x32xf32>
    %104 = arith.addf %71, %103 : vector<16x32xf32>
    %cst_57 = arith.constant dense<0.000000e+00> : vector<16xf32>
    %105 = vector.multi_reduction <add>, %104, %cst_57 [1] : vector<16x32xf32> to vector<16xf32>
    %106 = vector.shape_cast %105 : vector<16xf32> to vector<16x1xf32>
    %cst_58 = arith.constant 3.200000e+01 : f32
    %107 = vector.broadcast %cst_58 : f32 to vector<16x1xf32>
    %108 = arith.divf %106, %107 : vector<16x1xf32>
    %109 = vector.broadcast %108 : vector<16x1xf32> to vector<16x32xf32>
    %110 = arith.subf %104, %109 : vector<16x32xf32>
    %111 = arith.mulf %110, %110 : vector<16x32xf32>
    %cst_59 = arith.constant dense<0.000000e+00> : vector<16xf32>
    %112 = vector.multi_reduction <add>, %111, %cst_59 [1] : vector<16x32xf32> to vector<16xf32>
    %113 = vector.shape_cast %112 : vector<16xf32> to vector<16x1xf32>
    %cst_60 = arith.constant 0.0322580636 : f32
    %114 = vector.broadcast %cst_60 : f32 to vector<16x1xf32>
    %115 = arith.mulf %113, %114 : vector<16x1xf32>
    %116 = math.sqrt %115 : vector<16x1xf32>
    %117 = vector.broadcast %5 : vector<1x32xf32> to vector<16x32xf32>
    %118 = arith.mulf %117, %110 : vector<16x32xf32>
    %cst_61 = arith.constant 9.99999997E-7 : f32
    %119 = vector.broadcast %cst_61 : f32 to vector<16x1xf32>
    %120 = arith.addf %116, %119 : vector<16x1xf32>
    %121 = vector.broadcast %120 : vector<16x1xf32> to vector<16x32xf32>
    %122 = arith.divf %118, %121 : vector<16x32xf32>
    %123 = vector.broadcast %6 : vector<1x32xf32> to vector<16x32xf32>
    %124 = arith.addf %122, %123 : vector<16x32xf32>
    %c0_62 = arith.constant 0 : index
    %c0_63 = arith.constant 0 : index
    %125 = vector.load %arg20[%c0_62, %c0_63] : memref<16x32xf32, #tpu.memory_space<vmem>>, vector<16x32xf32>
    tpu.vector_store %arg20[%c0_62, %c0_63], %124 {strides = array<i32>} : memref<16x32xf32, #tpu.memory_space<vmem>>, vector<16x32xf32>,
    return
  }
  func.func @transform_0(%arg0: i32) -> (i32, i32) {
    %c0_i32 = arith.constant 0 : i32
    %c0_i32_0 = arith.constant 0 : i32
    return %arg0, %c0_i32 : i32, i32
  }
  func.func @transform_1(%arg0: i32) -> (i32, i32) {
    %c0_i32 = arith.constant 0 : i32
    %c0_i32_0 = arith.constant 0 : i32
    %c0_i32_1 = arith.constant 0 : i32
    return %c0_i32, %c0_i32_0 : i32, i32
  }
  func.func @transform_2(%arg0: i32) -> (i32, i32) {
    %c0_i32 = arith.constant 0 : i32
    %c0_i32_0 = arith.constant 0 : i32
    %c0_i32_1 = arith.constant 0 : i32
    return %c0_i32, %c0_i32_0 : i32, i32
  }
  func.func @transform_3(%arg0: i32) -> (i32, i32) {
    %c0_i32 = arith.constant 0 : i32
    %c0_i32_0 = arith.constant 0 : i32
    %c0_i32_1 = arith.constant 0 : i32
    return %c0_i32, %c0_i32_0 : i32, i32
  }
  func.func @transform_4(%arg0: i32) -> (i32, i32) {
    %c0_i32 = arith.constant 0 : i32
    %c0_i32_0 = arith.constant 0 : i32
    %c0_i32_1 = arith.constant 0 : i32
    return %c0_i32, %c0_i32_0 : i32, i32
  }
  func.func @transform_5(%arg0: i32) -> (i32, i32) {
    %c0_i32 = arith.constant 0 : i32
    %c0_i32_0 = arith.constant 0 : i32
    %c0_i32_1 = arith.constant 0 : i32
    return %c0_i32, %c0_i32_0 : i32, i32
  }
  func.func @transform_6(%arg0: i32) -> (i32, i32) {
    %c0_i32 = arith.constant 0 : i32
    %c0_i32_0 = arith.constant 0 : i32
    %c0_i32_1 = arith.constant 0 : i32
    return %c0_i32, %c0_i32_0 : i32, i32
  }
  func.func @transform_7(%arg0: i32) -> (i32, i32) {
    %c0_i32 = arith.constant 0 : i32
    %c0_i32_0 = arith.constant 0 : i32
    %c0_i32_1 = arith.constant 0 : i32
    return %c0_i32, %c0_i32_0 : i32, i32
  }
  func.func @transform_8(%arg0: i32) -> (i32, i32) {
    %c0_i32 = arith.constant 0 : i32
    %c0_i32_0 = arith.constant 0 : i32
    %c0_i32_1 = arith.constant 0 : i32
    return %c0_i32, %c0_i32_0 : i32, i32
  }
  func.func @transform_9(%arg0: i32) -> (i32, i32) {
    %c0_i32 = arith.constant 0 : i32
    %c0_i32_0 = arith.constant 0 : i32
    %c0_i32_1 = arith.constant 0 : i32
    return %c0_i32, %c0_i32_0 : i32, i32
  }
  func.func @transform_10(%arg0: i32) -> (i32, i32) {
    %c0_i32 = arith.constant 0 : i32
    %c0_i32_0 = arith.constant 0 : i32
    %c0_i32_1 = arith.constant 0 : i32
    return %c0_i32, %c0_i32_0 : i32, i32
  }
  func.func @transform_11(%arg0: i32) -> (i32, i32) {
    %c0_i32 = arith.constant 0 : i32
    %c0_i32_0 = arith.constant 0 : i32
    %c0_i32_1 = arith.constant 0 : i32
    return %c0_i32, %c0_i32_0 : i32, i32
  }
  func.func @transform_12(%arg0: i32) -> (i32, i32) {
    %c0_i32 = arith.constant 0 : i32
    %c0_i32_0 = arith.constant 0 : i32
    %c0_i32_1 = arith.constant 0 : i32
    return %c0_i32, %c0_i32_0 : i32, i32
  }
  func.func @transform_13(%arg0: i32) -> (i32, i32) {
    %c0_i32 = arith.constant 0 : i32
    %c0_i32_0 = arith.constant 0 : i32
    %c0_i32_1 = arith.constant 0 : i32
    return %c0_i32, %c0_i32_0 : i32, i32
  }
  func.func @transform_14(%arg0: i32) -> (i32, i32) {
    %c0_i32 = arith.constant 0 : i32
    %c0_i32_0 = arith.constant 0 : i32
    %c0_i32_1 = arith.constant 0 : i32
    return %c0_i32, %c0_i32_0 : i32, i32
  }
  func.func @transform_15(%arg0: i32) -> (i32, i32) {
    %c0_i32 = arith.constant 0 : i32
    %c0_i32_0 = arith.constant 0 : i32
    %c0_i32_1 = arith.constant 0 : i32
    return %c0_i32, %c0_i32_0 : i32, i32
  }
  func.func @transform_16(%arg0: i32) -> (i32, i32) {
    %c0_i32 = arith.constant 0 : i32
    %c0_i32_0 = arith.constant 0 : i32
    %c0_i32_1 = arith.constant 0 : i32
    return %c0_i32, %c0_i32_0 : i32, i32
  }
  func.func @transform_17(%arg0: i32) -> (i32, i32) {
    %c0_i32 = arith.constant 0 : i32
    %c0_i32_0 = arith.constant 0 : i32
    %c0_i32_1 = arith.constant 0 : i32
    return %c0_i32, %c0_i32_0 : i32, i32
  }
  func.func @transform_18(%arg0: i32) -> (i32, i32) {
    %c0_i32 = arith.constant 0 : i32
    %c0_i32_0 = arith.constant 0 : i32
    %c0_i32_1 = arith.constant 0 : i32
    return %c0_i32, %c0_i32_0 : i32, i32
  }
  func.func @transform_19(%arg0: i32) -> (i32, i32) {
    %c0_i32 = arith.constant 0 : i32
    %c0_i32_0 = arith.constant 0 : i32
    return %arg0, %c0_i32 : i32, i32
  }
}

</mosaic_0001>

<llo_original>
// kernel: tpu_custom_call.1
$region0: #{tpu_custom_call.1}
  #allocation0 [shape = 'u32[]', space=smem, size = 0x4, offset = 0x4, fixed_abs, tag = 'smem constant byte address 0x4 - core index']
  #allocation1 [shape = 'u32[144,128]{1,0:T(1,128)}', space=vmem, size = 0x12000, scoped, tag = 'internal scratch']
  %s0 = inlined_call_operand.vmem [shape: f32[16,32], index: 0, kind: input, shape index: {}]
  %s1 = inlined_call_operand.vmem [shape: bf16[32,32], index: 1, kind: input, shape index: {}]
  %s2 = inlined_call_operand.vmem [shape: f32[1,32], index: 2, kind: input, shape index: {}]
  %s3 = inlined_call_operand.vmem [shape: bf16[32,32], index: 3, kind: input, shape index: {}]
  %s4 = inlined_call_operand.vmem [shape: f32[1,32], index: 4, kind: input, shape index: {}]
  %s5 = inlined_call_operand.hbm [shape: bf16[32,32], index: 5, kind: input, shape index: {}]
  %s6 = inlined_call_operand.hbm [shape: f32[1,32], index: 6, kind: input, shape index: {}]
  %s7 = inlined_call_operand.hbm [shape: bf16[32,32], index: 7, kind: input, shape index: {}]
  %s8 = inlined_call_operand.hbm [shape: f32[1,32], index: 8, kind: input, shape index: {}]
  %s9 = inlined_call_operand.hbm [shape: f32[1,32], index: 9, kind: input, shape index: {}]
  %s10 = inlined_call_operand.vmem [shape: f32[1,32], index: 10, kind: input, shape index: {}]
  %s11 = inlined_call_operand.vmem [shape: bf16[32,64], index: 11, kind: input, shape index: {}]
  %s12 = inlined_call_operand.vmem [shape: f32[1,64], index: 12, kind: input, shape index: {}]
  %s13 = inlined_call_operand.vmem [shape: bf16[64,32], index: 13, kind: input, shape index: {}]
  %s14 = inlined_call_operand.vmem [shape: f32[1,32], index: 14, kind: input, shape index: {}]
  %s15 = inlined_call_operand.vmem [shape: f32[1,32], index: 15, kind: input, shape index: {}]
  %s16 = inlined_call_operand.vmem [shape: f32[1,32], index: 16, kind: input, shape index: {}]
  %s17 = inlined_call_operand.vmem [shape: f32[1,32], index: 17, kind: input, shape index: {}]
  %s18 = inlined_call_operand.vmem [shape: f32[1,32], index: 18, kind: input, shape index: {}]
  %s19 = inlined_call_operand.hbm [shape: f32[16,32], index: 19, kind: output, shape index: {}]
  %s20 = sld [smem:[#allocation0]]
  $region106: #{tpu_custom_call.1} parent=0
    _
  %s22 = ssub.s32 1, %s20
  %s23 = scalar_select 0, %s22, %s20
  $region1: #{tpu_custom_call.1} parent=0
    #allocation2 [shape = 'u8[8192]{0}', space=vmem, size = 0x2000, scoped, tag = 'input window, operand 5, single buffered']
    #allocation3 [shape = 's32[1]{0}', space=sflag, size = 0x4, scoped, tag = 'scoped memory for tpu_custom_call.1']
    #allocation4 [shape = 's32[1]{0}', space=sflag, size = 0x4, scoped, tag = 'scoped memory for tpu_custom_call.1']
    #allocation5 [shape = 'u8[512]{0}', space=vmem, size = 0x400, scoped, tag = 'input window, operand 6, single buffered']
    #allocation6 [shape = 's32[1]{0}', space=sflag, size = 0x4, scoped, tag = 'scoped memory for tpu_custom_call.1']
    #allocation7 [shape = 'u8[8192]{0}', space=vmem, size = 0x2000, scoped, tag = 'input window, operand 7, single buffered']
    #allocation8 [shape = 'u8[512]{0}', space=vmem, size = 0x400, scoped, tag = 'input window, operand 8, single buffered']
    #allocation9 [shape = 's32[1]{0}', space=sflag, size = 0x4, scoped, tag = 'scoped memory for tpu_custom_call.1']
    #allocation10 [shape = 'u8[512]{0}', space=vmem, size = 0x400, scoped, tag = 'input window, operand 9, single buffered']
    #allocation11 [shape = 'u8[8192]{0}', space=vmem, size = 0x2000, scoped, tag = 'output window, operand 0, single buffered']
    %24 = vsyncpa [#allocation3], 0
    %25 = vsyncpa [#allocation6], 0
    %26 = vsyncpa [#allocation9], 0
    %27 = vsyncpa [#allocation4], 0
    // Predicated region
    $region2: #{tpu_custom_call.1} parent=1 // pred_check
      _
    $region3: #{tpu_custom_call.1} parent=1 // pred_check_branch
      %29 = sbr.rel (0) target = $region5
    $region4: #{tpu_custom_call.1} parent=1 // pred_region
      _
    $region5: #{tpu_custom_call.1} parent=1 // pred_fallthru
      _
    // Predicated region
    $region6: #{tpu_custom_call.1} parent=1 // pred_check
      _
    $region7: #{tpu_custom_call.1} parent=1 // pred_check_branch
      %31 = sbr.rel (0) target = $region9
    $region8: #{tpu_custom_call.1} parent=1 // pred_region
      _
    $region9: #{tpu_custom_call.1} parent=1 // pred_fallthru
      _
    // Predicated region
    $region10: #{tpu_custom_call.1} parent=1 // pred_check
      _
    $region11: #{tpu_custom_call.1} parent=1 // pred_check_branch
      %33 = sbr.rel (0) target = $region13
    $region12: #{tpu_custom_call.1} parent=1 // pred_region
      _
    $region13: #{tpu_custom_call.1} parent=1 // pred_fallthru
      _
    // Predicated region
    $region14: #{tpu_custom_call.1} parent=1 // pred_check
      _
    $region15: #{tpu_custom_call.1} parent=1 // pred_check_branch
      %35 = sbr.rel (0) target = $region17
    $region16: #{tpu_custom_call.1} parent=1 // pred_region
      _
    $region17: #{tpu_custom_call.1} parent=1 // pred_fallthru
      _
    // Predicated region
    $region18: #{tpu_custom_call.1} parent=1 // pred_check
      _
    $region19: #{tpu_custom_call.1} parent=1 // pred_check_branch
      %37 = sbr.rel (0) target = $region21
    $region20: #{tpu_custom_call.1} parent=1 // pred_region
      _
    $region21: #{tpu_custom_call.1} parent=1 // pred_fallthru
      _
    // Predicated region
    $region22: #{tpu_custom_call.1} parent=1 // pred_check
      _
    $region23: #{tpu_custom_call.1} parent=1 // pred_check_branch
      %39 = sbr.rel (0) target = $region25
    $region24: #{tpu_custom_call.1} parent=1 // pred_region
      %s41 = ssub.s32 256, 256
      %42 = vsyncadd [#allocation3], %s41
      %s43 = sshll.u32 [#allocation2], 4
      %s44 = int_to_ptr.vmem [resolvable:$true] %s43
      %49 = dma.hbm_to_vmem [thread:$0]  %s5, 256, %s44, [#allocation3], 64, 64, 4
    $region25: #{tpu_custom_call.1} parent=1 // pred_fallthru
      _
    // Predicated region
    $region26: #{tpu_custom_call.1} parent=1 // pred_check
      _
    $region27: #{tpu_custom_call.1} parent=1 // pred_check_branch
      %51 = sbr.rel (0) target = $region29
    $region28: #{tpu_custom_call.1} parent=1 // pred_region
      %s53 = ssub.s32 16, 16
      %54 = vsyncadd [#allocation6], %s53
      %s56 = sshll.u32 [#allocation5], 4
      %s57 = int_to_ptr.vmem [resolvable:$true] %s56
      %59 = dma.hbm_to_vmem [thread:$0]  %s6, 16, %s57, [#allocation6]
    $region29: #{tpu_custom_call.1} parent=1 // pred_fallthru
      _
    // Predicated region
    $region30: #{tpu_custom_call.1} parent=1 // pred_check
      _
    $region31: #{tpu_custom_call.1} parent=1 // pred_check_branch
      %61 = sbr.rel (0) target = $region33
    $region32: #{tpu_custom_call.1} parent=1 // pred_region
      %s63 = ssub.s32 256, 256
      %64 = vsyncadd [#allocation6], %s63
      %s65 = sshll.u32 [#allocation7], 4
      %s66 = int_to_ptr.vmem [resolvable:$true] %s65
      %71 = dma.hbm_to_vmem [thread:$0]  %s7, 256, %s66, [#allocation6], 64, 64, 4
    $region33: #{tpu_custom_call.1} parent=1 // pred_fallthru
      _
    // Predicated region
    $region34: #{tpu_custom_call.1} parent=1 // pred_check
      _
    $region35: #{tpu_custom_call.1} parent=1 // pred_check_branch
      %73 = sbr.rel (0) target = $region37
    $region36: #{tpu_custom_call.1} parent=1 // pred_region
      %s75 = ssub.s32 16, 16
      %76 = vsyncadd [#allocation9], %s75
      %s78 = sshll.u32 [#allocation8], 4
      %s79 = int_to_ptr.vmem [resolvable:$true] %s78
      %81 = dma.hbm_to_vmem [thread:$0]  %s8, 16, %s79, [#allocation9]
    $region37: #{tpu_custom_call.1} parent=1 // pred_fallthru
      _
    // Predicated region
    $region38: #{tpu_custom_call.1} parent=1 // pred_check
      _
    $region39: #{tpu_custom_call.1} parent=1 // pred_check_branch
      %83 = sbr.rel (0) target = $region41
    $region40: #{tpu_custom_call.1} parent=1 // pred_region
      %s85 = ssub.s32 16, 16
      %86 = vsyncadd [#allocation9], %s85
      %s88 = sshll.u32 [#allocation10], 4
      %s89 = int_to_ptr.vmem [resolvable:$true] %s88
      %91 = dma.hbm_to_vmem [thread:$0]  %s9, 16, %s89, [#allocation9]
    $region41: #{tpu_custom_call.1} parent=1 // pred_fallthru
      _
    // Predicated region
    $region42: #{tpu_custom_call.1} parent=1 // pred_check
      _
    $region43: #{tpu_custom_call.1} parent=1 // pred_check_branch
      %93 = sbr.rel (0) target = $region45
    $region44: #{tpu_custom_call.1} parent=1 // pred_region
      _
    $region45: #{tpu_custom_call.1} parent=1 // pred_fallthru
      _
    // Predicated region
    $region46: #{tpu_custom_call.1} parent=1 // pred_check
      _
    $region47: #{tpu_custom_call.1} parent=1 // pred_check_branch
      %95 = sbr.rel (0) target = $region49
    $region48: #{tpu_custom_call.1} parent=1 // pred_region
      _
    $region49: #{tpu_custom_call.1} parent=1 // pred_fallthru
      _
    // Predicated region
    $region50: #{tpu_custom_call.1} parent=1 // pred_check
      _
    $region51: #{tpu_custom_call.1} parent=1 // pred_check_branch
      %97 = sbr.rel (0) target = $region53
    $region52: #{tpu_custom_call.1} parent=1 // pred_region
      _
    $region53: #{tpu_custom_call.1} parent=1 // pred_fallthru
      _
    // Predicated region
    $region54: #{tpu_custom_call.1} parent=1 // pred_check
      _
    $region55: #{tpu_custom_call.1} parent=1 // pred_check_branch
      %99 = sbr.rel (0) target = $region57
    $region56: #{tpu_custom_call.1} parent=1 // pred_region
      _
    $region57: #{tpu_custom_call.1} parent=1 // pred_fallthru
      _
    // Predicated region
    $region58: #{tpu_custom_call.1} parent=1 // pred_check
      _
    $region59: #{tpu_custom_call.1} parent=1 // pred_check_branch
      %101 = sbr.rel (0) target = $region61
    $region60: #{tpu_custom_call.1} parent=1 // pred_region
      _
    $region61: #{tpu_custom_call.1} parent=1 // pred_fallthru
      _
    // Predicated region
    $region62: #{tpu_custom_call.1} parent=1 // pred_check
      _
    $region63: #{tpu_custom_call.1} parent=1 // pred_check_branch
      %103 = sbr.rel (0) target = $region65
    $region64: #{tpu_custom_call.1} parent=1 // pred_region
      _
    $region65: #{tpu_custom_call.1} parent=1 // pred_fallthru
      _
    // Predicated region
    $region66: #{tpu_custom_call.1} parent=1 // pred_check
      _
    $region67: #{tpu_custom_call.1} parent=1 // pred_check_branch
      %105 = sbr.rel (0) target = $region69
    $region68: #{tpu_custom_call.1} parent=1 // pred_region
      _
    $region69: #{tpu_custom_call.1} parent=1 // pred_fallthru
      _
    // Predicated region
    $region70: #{tpu_custom_call.1} parent=1 // pred_check
      _
    $region71: #{tpu_custom_call.1} parent=1 // pred_check_branch
      %107 = sbr.rel (0) target = $region73
    $region72: #{tpu_custom_call.1} parent=1 // pred_region
      _
    $region73: #{tpu_custom_call.1} parent=1 // pred_fallthru
      _
    // Predicated region
    $region74: #{tpu_custom_call.1} parent=1 // pred_check
      _
    $region75: #{tpu_custom_call.1} parent=1 // pred_check_branch
      %109 = sbr.rel (0) target = $region77
    $region76: #{tpu_custom_call.1} parent=1 // pred_region
      _
    $region77: #{tpu_custom_call.1} parent=1 // pred_fallthru
      _
    // Predicated region
    $region78: #{tpu_custom_call.1} parent=1 // pred_check
      _
    $region79: #{tpu_custom_call.1} parent=1 // pred_check_branch
      %111 = sbr.rel (0) target = $region81
    $region80: #{tpu_custom_call.1} parent=1 // pred_region
      %112 = dma.done [#allocation3], 256
    $region81: #{tpu_custom_call.1} parent=1 // pred_fallthru
      _
    // Predicated region
    $region82: #{tpu_custom_call.1} parent=1 // pred_check
      _
    $region83: #{tpu_custom_call.1} parent=1 // pred_check_branch
      %114 = sbr.rel (0) target = $region85
    $region84: #{tpu_custom_call.1} parent=1 // pred_region
      %115 = dma.done [#allocation6], 16
    $region85: #{tpu_custom_call.1} parent=1 // pred_fallthru
      _
    // Predicated region
    $region86: #{tpu_custom_call.1} parent=1 // pred_check
      _
    $region87: #{tpu_custom_call.1} parent=1 // pred_check_branch
      %117 = sbr.rel (0) target = $region89
    $region88: #{tpu_custom_call.1} parent=1 // pred_region
      %118 = dma.done [#allocation6], 256
    $region89: #{tpu_custom_call.1} parent=1 // pred_fallthru
      _
    // Predicated region
    $region90: #{tpu_custom_call.1} parent=1 // pred_check
      _
    $region91: #{tpu_custom_call.1} parent=1 // pred_check_branch
      %120 = sbr.rel (0) target = $region93
    $region92: #{tpu_custom_call.1} parent=1 // pred_region
      %121 = dma.done [#allocation9], 16
    $region93: #{tpu_custom_call.1} parent=1 // pred_fallthru
      _
    // Predicated region
    $region94: #{tpu_custom_call.1} parent=1 // pred_check
      _
    $region95: #{tpu_custom_call.1} parent=1 // pred_check_branch
      %123 = sbr.rel (0) target = $region97
    $region96: #{tpu_custom_call.1} parent=1 // pred_region
      %124 = dma.done [#allocation9], 16
    $region97: #{tpu_custom_call.1} parent=1 // pred_fallthru
      _
    %v126 = vld [vmem:[%s0] sm:$0xff]
    %v127 = vld [vmem:[%s0 + $0x8] sm:$0xff]
    %v128 = vld [vmem:[#allocation10] sm:$0x1]
    %v129 = vld [vmem:[%s10] sm:$0x1]
    %v130 = vld [vmem:[%s15] sm:$0x1]
    %v131 = vld [vmem:[%s16] sm:$0x1]
    %v132 = vld [vmem:[%s17] sm:$0x1]
    %v133 = vld [vmem:[%s18] sm:$0x1]
    %v134 = vld [vmem:[#allocation8] sm:$0x1]
    %v135 = vld [vmem:[%s12] sm:$0x1]
    %v136 = vld [vmem:[%s14] sm:$0x1]
    %vm137 = vcmask 261120
    %v138 = vsel %vm137, %v126, 0.0
    %139 = vadd.xlane.f32.xlu0 %v138
    %v140 = vpop.xlane.xlu0 %139
    %v141 = vsel %vm137, %v127, 0.0
    %142 = vadd.xlane.f32.xlu0 %v141
    %v143 = vpop.xlane.xlu0 %142
    %v144 = vrcp.pop 32.0
    %v145 = vmul.f32 %v140, %v144
    %v146 = vmul.f32 %v143, %v144
    %v147 = vsub.f32 %v126, %v145
    %v148 = vsub.f32 %v127, %v146
    %v149 = vmul.f32 %v147, %v147
    %v150 = vmul.f32 %v148, %v148
    %v151 = vsel %vm137, %v149, 0.0
    %152 = vadd.xlane.f32.xlu0 %v151
    %v153 = vpop.xlane.xlu0 %152
    %v154 = vsel %vm137, %v150, 0.0
    %155 = vadd.xlane.f32.xlu0 %v154
    %v156 = vpop.xlane.xlu0 %155
    %v157 = vmul.f32 %v153, 0.032258064
    %v158 = vmul.f32 %v156, 0.032258064
    %v159 = vrsqrt.pop %v157
    %v160 = vmul.f32 %v157, %v159
    %vm161 = vcmp.eq.f32.partialorder %v157, inf
    %v162 = vsel %vm161, %v157, %v160
    %vm163 = vcmp.eq.f32.partialorder %v157, 0.0
    %v164 = vand.u32 %v157, 2147483648
    %v165 = vsel %vm163, %v164, %v162
    %v166 = vrsqrt.pop %v158
    %v167 = vmul.f32 %v158, %v166
    %vm168 = vcmp.eq.f32.partialorder %v158, inf
    %v169 = vsel %vm168, %v158, %v167
    %vm170 = vcmp.eq.f32.partialorder %v158, 0.0
    %v171 = vand.u32 %v158, 2147483648
    %v172 = vsel %vm170, %v171, %v169
    %v174 = vlaneseq
    %v175 = vshrl.u32 %v174, 7
    %v176 = vsub.s32 0, %v175
    %v177 = vrot.slane %v128, %v176
    %v179 = vmul.f32 %v177, %v147
    %v180 = vmul.f32 %v177, %v148
    %v181 = vadd.f32 %v165, 1e-06
    %v182 = vadd.f32 %v172, 1e-06
    %v183 = vrcp.pop %v181
    %v184 = vmul.f32 %v179, %v183
    %v185 = vrcp.pop %v182
    %v186 = vmul.f32 %v180, %v185
    %v188 = vlaneseq
    %v189 = vshrl.u32 %v188, 7
    %v190 = vsub.s32 0, %v189
    %v191 = vrot.slane %v129, %v190
    %v193 = vadd.f32 %v184, %v191
    %v194 = vadd.f32 %v186, %v191
    %v195 = vpack.c.bf16 %v194, %v193
    %v196 = vld [vmem:[%s1] sm:$0xf]
    %v197 = vld [vmem:[%s1 + $0x4] sm:$0xf]
    %v198 = vld [vmem:[%s1 + $0x8] sm:$0xf]
    %v199 = vld [vmem:[%s1 + $0xc] sm:$0xf]
    %v200 = vld [vmem:[%s2] sm:$0x1]
    %v202 = vlaneseq
    %v203 = vshrl.u32 %v202, 7
    %v204 = vsub.s32 0, %v203
    %v205 = vrot.slane %v200, %v204
    %v211 = vunpack.c.l.b16 %v196
    %v212 = vunpack.c.l.b16 %v197
    %v213 = vunpack.c.l.b16 %v198
    %v214 = vunpack.c.l.b16 %v199
    %v215 = vpack.c.b16 %v212, %v211
    %v216 = vpack.c.b16 %v214, %v213
    %v220 = vsel %vm137, %v195, 0
    %222 = vmatprep.subr.bf16.mxu0 0
    %223 = vmatpush1.bf16.msra.mxu0 %v215
    %224 = vmatprep.subr.bf16.mxu0 0
    %225 = vmatpush1.bf16.msra.mxu0 %v216
    %226 = vmatprep.subr.bf16.mxu0 0
    %227 = vmatpush1.bf16.msra.mxu0 0
    %228 = vmatprep.subr.bf16.mxu0 0
    %229 = vmatpush1.bf16.msra.mxu0 0
    %230 = vmatprep.subr.bf16.mxu0 0
    %231 = vmatpush1.bf16.msra.mxu0 0
    %232 = vmatprep.subr.bf16.mxu0 0
    %233 = vmatpush1.bf16.msra.mxu0 0
    %234 = vmatprep.subr.bf16.mxu0 0
    %235 = vmatpush1.bf16.msra.mxu0 0
    %236 = vmatprep.subr.bf16.mxu0 0
    %237 = vmatpush1.bf16.msra.mxu0 0
    %238 = vmatprep.subr.bf16.mxu0 0
    %239 = vmatpush1.bf16.msra.mxu0 0
    %240 = vmatprep.subr.bf16.mxu0 0
    %241 = vmatpush1.bf16.msra.mxu0 0
    %242 = vmatprep.subr.bf16.mxu0 0
    %243 = vmatpush1.bf16.msra.mxu0 0
    %244 = vmatprep.subr.bf16.mxu0 0
    %245 = vmatpush1.bf16.msra.mxu0 0
    %246 = vmatprep.subr.bf16.mxu0 0
    %247 = vmatpush1.bf16.msra.mxu0 0
    %248 = vmatprep.subr.bf16.mxu0 0
    %249 = vmatpush1.bf16.msra.mxu0 0
    %250 = vmatprep.subr.bf16.mxu0 0
    %251 = vmatpush1.bf16.msra.mxu0 0
    %252 = vmatprep.subr.bf16.mxu0 0
    %253 = vmatpush1.bf16.msra.mxu0 0
    %254 = vmatprep.mubr.bf16.mxu0 0
    %255 = vmatmul.mubr.bf16.gmra.mrb[0].mxu0 %v220
    %v256 = vpop.f32.mrb[0].mxu0
    %v257 = vadd.f32 %v205, %v256
    %v258 = vpop.f32.mrb[0].mxu0
    %v259 = vpop.f32.mrb[0].mxu0
    %v260 = vadd.f32 %v205, %v259
    %v261 = vpop.f32.mrb[0].mxu0
    %262 = vdwg.mxu0
    %v263 = vld [vmem:[%s3] sm:$0xf]
    %v264 = vld [vmem:[%s3 + $0x4] sm:$0xf]
    %v265 = vld [vmem:[%s3 + $0x8] sm:$0xf]
    %v266 = vld [vmem:[%s3 + $0xc] sm:$0xf]
    %v267 = vld [vmem:[%s4] sm:$0x1]
    %v269 = vlaneseq
    %v270 = vshrl.u32 %v269, 7
    %v271 = vsub.s32 0, %v270
    %v272 = vrot.slane %v267, %v271
    %v278 = vunpack.c.l.b16 %v263
    %v279 = vunpack.c.l.b16 %v264
    %v280 = vunpack.c.l.b16 %v265
    %v281 = vunpack.c.l.b16 %v266
    %v282 = vpack.c.b16 %v279, %v278
    %v283 = vpack.c.b16 %v281, %v280
    %286 = vmatprep.subr.bf16.mxu0 0
    %287 = vmatpush1.bf16.msra.mxu0 %v282
    %288 = vmatprep.subr.bf16.mxu0 0
    %289 = vmatpush1.bf16.msra.mxu0 %v283
    %290 = vmatprep.subr.bf16.mxu0 0
    %291 = vmatpush1.bf16.msra.mxu0 0
    %292 = vmatprep.subr.bf16.mxu0 0
    %293 = vmatpush1.bf16.msra.mxu0 0
    %294 = vmatprep.subr.bf16.mxu0 0
    %295 = vmatpush1.bf16.msra.mxu0 0
    %296 = vmatprep.subr.bf16.mxu0 0
    %297 = vmatpush1.bf16.msra.mxu0 0
    %298 = vmatprep.subr.bf16.mxu0 0
    %299 = vmatpush1.bf16.msra.mxu0 0
    %300 = vmatprep.subr.bf16.mxu0 0
    %301 = vmatpush1.bf16.msra.mxu0 0
    %302 = vmatprep.subr.bf16.mxu0 0
    %303 = vmatpush1.bf16.msra.mxu0 0
    %304 = vmatprep.subr.bf16.mxu0 0
    %305 = vmatpush1.bf16.msra.mxu0 0
    %306 = vmatprep.subr.bf16.mxu0 0
    %307 = vmatpush1.bf16.msra.mxu0 0
    %308 = vmatprep.subr.bf16.mxu0 0
    %309 = vmatpush1.bf16.msra.mxu0 0
    %310 = vmatprep.subr.bf16.mxu0 0
    %311 = vmatpush1.bf16.msra.mxu0 0
    %312 = vmatprep.subr.bf16.mxu0 0
    %313 = vmatpush1.bf16.msra.mxu0 0
    %314 = vmatprep.subr.bf16.mxu0 0
    %315 = vmatpush1.bf16.msra.mxu0 0
    %316 = vmatprep.subr.bf16.mxu0 0
    %317 = vmatpush1.bf16.msra.mxu0 0
    %318 = vmatprep.mubr.bf16.mxu0 0
    %319 = vmatmul.mubr.bf16.gmra.mrb[0].mxu0 %v220
    %v320 = vpop.f32.mrb[0].mxu0
    %v321 = vadd.f32 %v272, %v320
    %v322 = vpop.f32.mrb[0].mxu0
    %v323 = vpop.f32.mrb[0].mxu0
    %v324 = vadd.f32 %v272, %v323
    %v325 = vpop.f32.mrb[0].mxu0
    %326 = vdwg.mxu0
    %v327 = vld [vmem:[#allocation2] sm:$0xf]
    %v328 = vld [vmem:[#allocation2 + $0x4] sm:$0xf]
    %v329 = vld [vmem:[#allocation2 + $0x8] sm:$0xf]
    %v330 = vld [vmem:[#allocation2 + $0xc] sm:$0xf]
    %v331 = vld [vmem:[#allocation5] sm:$0x1]
    %v333 = vlaneseq
    %v334 = vshrl.u32 %v333, 7
    %v335 = vsub.s32 0, %v334
    %v336 = vrot.slane %v331, %v335
    %v342 = vunpack.c.l.b16 %v327
    %v343 = vunpack.c.l.b16 %v328
    %v344 = vunpack.c.l.b16 %v329
    %v345 = vunpack.c.l.b16 %v330
    %v346 = vpack.c.b16 %v343, %v342
    %v347 = vpack.c.b16 %v345, %v344
    %350 = vmatprep.subr.bf16.mxu0 0
    %351 = vmatpush1.bf16.msra.mxu0 %v346
    %352 = vmatprep.subr.bf16.mxu0 0
    %353 = vmatpush1.bf16.msra.mxu0 %v347
    %354 = vmatprep.subr.bf16.mxu0 0
    %355 = vmatpush1.bf16.msra.mxu0 0
    %356 = vmatprep.subr.bf16.mxu0 0
    %357 = vmatpush1.bf16.msra.mxu0 0
    %358 = vmatprep.subr.bf16.mxu0 0
    %359 = vmatpush1.bf16.msra.mxu0 0
    %360 = vmatprep.subr.bf16.mxu0 0
    %361 = vmatpush1.bf16.msra.mxu0 0
    %362 = vmatprep.subr.bf16.mxu0 0
    %363 = vmatpush1.bf16.msra.mxu0 0
    %364 = vmatprep.subr.bf16.mxu0 0
    %365 = vmatpush1.bf16.msra.mxu0 0
    %366 = vmatprep.subr.bf16.mxu0 0
    %367 = vmatpush1.bf16.msra.mxu0 0
    %368 = vmatprep.subr.bf16.mxu0 0
    %369 = vmatpush1.bf16.msra.mxu0 0
    %370 = vmatprep.subr.bf16.mxu0 0
    %371 = vmatpush1.bf16.msra.mxu0 0
    %372 = vmatprep.subr.bf16.mxu0 0
    %373 = vmatpush1.bf16.msra.mxu0 0
    %374 = vmatprep.subr.bf16.mxu0 0
    %375 = vmatpush1.bf16.msra.mxu0 0
    %376 = vmatprep.subr.bf16.mxu0 0
    %377 = vmatpush1.bf16.msra.mxu0 0
    %378 = vmatprep.subr.bf16.mxu0 0
    %379 = vmatpush1.bf16.msra.mxu0 0
    %380 = vmatprep.subr.bf16.mxu0 0
    %381 = vmatpush1.bf16.msra.mxu0 0
    %382 = vmatprep.mubr.bf16.mxu0 0
    %383 = vmatmul.mubr.bf16.gmra.mrb[0].mxu0 %v220
    %v384 = vpop.f32.mrb[0].mxu0
    %v385 = vadd.f32 %v336, %v384
    %v386 = vpop.f32.mrb[0].mxu0
    %v387 = vpop.f32.mrb[0].mxu0
    %v388 = vadd.f32 %v336, %v387
    %v389 = vpop.f32.mrb[0].mxu0
    %390 = vdwg.mxu0
    %v391 = vpack.c.bf16 %v257, %v257
    %v392 = vpack.c.bf16 %v260, %v260
    %v393 = vpack.c.bf16 %v321, %v321
    %v394 = vpack.c.bf16 %v324, %v324
    %v396 = vsel %vm137, %v391, 0
    %v399 = vsel %vm137, %v393, 0
    %401 = vmatprep.subr.bf16.mxu0 0
    %402 = vmatpush1.bf16.xpose.msra.mxu0 %v399
    %403 = vmatprep.subr.bf16.mxu0 0
    %404 = vmatpush1.bf16.xpose.msra.mxu0 0
    %405 = vmatprep.subr.bf16.mxu0 0
    %406 = vmatpush1.bf16.xpose.msra.mxu0 0
    %407 = vmatprep.subr.bf16.mxu0 0
    %408 = vmatpush1.bf16.xpose.msra.mxu0 0
    %409 = vmatprep.subr.bf16.mxu0 0
    %410 = vmatpush1.bf16.xpose.msra.mxu0 0
    %411 = vmatprep.subr.bf16.mxu0 0
    %412 = vmatpush1.bf16.xpose.msra.mxu0 0
    %413 = vmatprep.subr.bf16.mxu0 0
    %414 = vmatpush1.bf16.xpose.msra.mxu0 0
    %415 = vmatprep.subr.bf16.mxu0 0
    %416 = vmatpush1.bf16.xpose.msra.mxu0 0
    %417 = vmatprep.subr.bf16.mxu0 0
    %418 = vmatpush1.bf16.xpose.msra.mxu0 0
    %419 = vmatprep.subr.bf16.mxu0 0
    %420 = vmatpush1.bf16.xpose.msra.mxu0 0
    %421 = vmatprep.subr.bf16.mxu0 0
    %422 = vmatpush1.bf16.xpose.msra.mxu0 0
    %423 = vmatprep.subr.bf16.mxu0 0
    %424 = vmatpush1.bf16.xpose.msra.mxu0 0
    %425 = vmatprep.subr.bf16.mxu0 0
    %426 = vmatpush1.bf16.xpose.msra.mxu0 0
    %427 = vmatprep.subr.bf16.mxu0 0
    %428 = vmatpush1.bf16.xpose.msra.mxu0 0
    %429 = vmatprep.subr.bf16.mxu0 0
    %430 = vmatpush1.bf16.xpose.msra.mxu0 0
    %431 = vmatprep.subr.bf16.mxu0 0
    %432 = vmatpush1.bf16.xpose.msra.mxu0 0
    %433 = vmatprep.mubr.bf16.mxu0 0
    %434 = vmatmul.mubr.bf16.gmra.mrb[0].mxu0 %v396
    %v435 = vpop.f32.mrb[0].mxu0
    %v436 = vadd.f32 0.0, %v435
    %v437 = vpop.f32.mrb[0].mxu0
    %v438 = vpop.f32.mrb[0].mxu0
    %v439 = vpop.f32.mrb[0].mxu0
    %440 = vdwg.mxu0
    %v442 = vsel %vm137, %v392, 0
    %v445 = vsel %vm137, %v394, 0
    %447 = vmatprep.subr.bf16.mxu0 0
    %448 = vmatpush1.bf16.xpose.msra.mxu0 %v445
    %449 = vmatprep.subr.bf16.mxu0 0
    %450 = vmatpush1.bf16.xpose.msra.mxu0 0
    %451 = vmatprep.subr.bf16.mxu0 0
    %452 = vmatpush1.bf16.xpose.msra.mxu0 0
    %453 = vmatprep.subr.bf16.mxu0 0
    %454 = vmatpush1.bf16.xpose.msra.mxu0 0
    %455 = vmatprep.subr.bf16.mxu0 0
    %456 = vmatpush1.bf16.xpose.msra.mxu0 0
    %457 = vmatprep.subr.bf16.mxu0 0
    %458 = vmatpush1.bf16.xpose.msra.mxu0 0
    %459 = vmatprep.subr.bf16.mxu0 0
    %460 = vmatpush1.bf16.xpose.msra.mxu0 0
    %461 = vmatprep.subr.bf16.mxu0 0
    %462 = vmatpush1.bf16.xpose.msra.mxu0 0
    %463 = vmatprep.subr.bf16.mxu0 0
    %464 = vmatpush1.bf16.xpose.msra.mxu0 0
    %465 = vmatprep.subr.bf16.mxu0 0
    %466 = vmatpush1.bf16.xpose.msra.mxu0 0
    %467 = vmatprep.subr.bf16.mxu0 0
    %468 = vmatpush1.bf16.xpose.msra.mxu0 0
    %469 = vmatprep.subr.bf16.mxu0 0
    %470 = vmatpush1.bf16.xpose.msra.mxu0 0
    %471 = vmatprep.subr.bf16.mxu0 0
    %472 = vmatpush1.bf16.xpose.msra.mxu0 0
    %473 = vmatprep.subr.bf16.mxu0 0
    %474 = vmatpush1.bf16.xpose.msra.mxu0 0
    %475 = vmatprep.subr.bf16.mxu0 0
    %476 = vmatpush1.bf16.xpose.msra.mxu0 0
    %477 = vmatprep.subr.bf16.mxu0 0
    %478 = vmatpush1.bf16.xpose.msra.mxu0 0
    %479 = vmatprep.mubr.bf16.mxu0 0
    %480 = vmatmul.mubr.bf16.gmra.mrb[0].mxu0 %v442
    %v481 = vpop.f32.mrb[0].mxu0
    %v482 = vadd.f32 0.0, %v481
    %v483 = vpop.f32.mrb[0].mxu0
    %v484 = vpop.f32.mrb[0].mxu0
    %v485 = vpop.f32.mrb[0].mxu0
    %486 = vdwg.mxu0
    %vm487 = vcmask 64512
    %v488 = vsel %vm487, %v436, -inf
    %489 = vmax.xlane.f32.xlu0 %v488
    %v490 = vpop.xlane.xlu0 %489
    %v491 = vsel %vm487, %v482, -inf
    %492 = vmax.xlane.f32.xlu0 %v491
    %v493 = vpop.xlane.xlu0 %492
    %v494 = vsub.f32 %v436, %v490
    %v495 = vsub.f32 %v482, %v493
    %v496 = vmul.f32 %v494, 1.442695
    %v497 = vpow.pop %v496
    %v498 = vmul.f32 %v495, 1.442695
    %v499 = vpow.pop %v498
    %v500 = vsel %vm487, %v497, 0.0
    %501 = vadd.xlane.f32.xlu0 %v500
    %v502 = vpop.xlane.xlu0 %501
    %v503 = vsel %vm487, %v499, 0.0
    %504 = vadd.xlane.f32.xlu0 %v503
    %v505 = vpop.xlane.xlu0 %504
    %v506 = vrcp.pop %v502
    %v507 = vrcp.pop %v505
    %v508 = vmul.f32 %v497, %v506
    %v509 = vmul.f32 %v499, %v507
    %v510 = vpack.c.bf16 %v508, %v508
    %v511 = vpack.c.bf16 %v509, %v509
    %v512 = vpack.c.bf16 %v385, %v385
    %v513 = vpack.c.bf16 %v388, %v388
    %v515 = vsel %vm487, %v510, 0
    %vm517 = vcmask 1043456
    %v519 = vsel %vm517, %v512, 0
    %521 = vmatprep.subr.bf16.mxu0 0
    %522 = vmatpush1.bf16.msra.mxu0 %v519
    %523 = vmatprep.subr.bf16.mxu0 0
    %524 = vmatpush1.bf16.msra.mxu0 0
    %525 = vmatprep.subr.bf16.mxu0 0
    %526 = vmatpush1.bf16.msra.mxu0 0
    %527 = vmatprep.subr.bf16.mxu0 0
    %528 = vmatpush1.bf16.msra.mxu0 0
    %529 = vmatprep.subr.bf16.mxu0 0
    %530 = vmatpush1.bf16.msra.mxu0 0
    %531 = vmatprep.subr.bf16.mxu0 0
    %532 = vmatpush1.bf16.msra.mxu0 0
    %533 = vmatprep.subr.bf16.mxu0 0
    %534 = vmatpush1.bf16.msra.mxu0 0
    %535 = vmatprep.subr.bf16.mxu0 0
    %536 = vmatpush1.bf16.msra.mxu0 0
    %537 = vmatprep.subr.bf16.mxu0 0
    %538 = vmatpush1.bf16.msra.mxu0 0
    %539 = vmatprep.subr.bf16.mxu0 0
    %540 = vmatpush1.bf16.msra.mxu0 0
    %541 = vmatprep.subr.bf16.mxu0 0
    %542 = vmatpush1.bf16.msra.mxu0 0
    %543 = vmatprep.subr.bf16.mxu0 0
    %544 = vmatpush1.bf16.msra.mxu0 0
    %545 = vmatprep.subr.bf16.mxu0 0
    %546 = vmatpush1.bf16.msra.mxu0 0
    %547 = vmatprep.subr.bf16.mxu0 0
    %548 = vmatpush1.bf16.msra.mxu0 0
    %549 = vmatprep.subr.bf16.mxu0 0
    %550 = vmatpush1.bf16.msra.mxu0 0
    %551 = vmatprep.subr.bf16.mxu0 0
    %552 = vmatpush1.bf16.msra.mxu0 0
    %553 = vmatprep.mubr.bf16.mxu0 0
    %554 = vmatmul.mubr.bf16.gmra.mrb[0].mxu0 %v515
    %v555 = vpop.f32.mrb[0].mxu0
    %v556 = vadd.f32 0.0, %v555
    %v557 = vpop.f32.mrb[0].mxu0
    %v558 = vpop.f32.mrb[0].mxu0
    %v559 = vpop.f32.mrb[0].mxu0
    %560 = vdwg.mxu0
    %v562 = vsel %vm487, %v511, 0
    %v565 = vsel %vm517, %v513, 0
    %567 = vmatprep.subr.bf16.mxu0 0
    %568 = vmatpush1.bf16.msra.mxu0 %v565
    %569 = vmatprep.subr.bf16.mxu0 0
    %570 = vmatpush1.bf16.msra.mxu0 0
    %571 = vmatprep.subr.bf16.mxu0 0
    %572 = vmatpush1.bf16.msra.mxu0 0
    %573 = vmatprep.subr.bf16.mxu0 0
    %574 = vmatpush1.bf16.msra.mxu0 0
    %575 = vmatprep.subr.bf16.mxu0 0
    %576 = vmatpush1.bf16.msra.mxu0 0
    %577 = vmatprep.subr.bf16.mxu0 0
    %578 = vmatpush1.bf16.msra.mxu0 0
    %579 = vmatprep.subr.bf16.mxu0 0
    %580 = vmatpush1.bf16.msra.mxu0 0
    %581 = vmatprep.subr.bf16.mxu0 0
    %582 = vmatpush1.bf16.msra.mxu0 0
    %583 = vmatprep.subr.bf16.mxu0 0
    %584 = vmatpush1.bf16.msra.mxu0 0
    %585 = vmatprep.subr.bf16.mxu0 0
    %586 = vmatpush1.bf16.msra.mxu0 0
    %587 = vmatprep.subr.bf16.mxu0 0
    %588 = vmatpush1.bf16.msra.mxu0 0
    %589 = vmatprep.subr.bf16.mxu0 0
    %590 = vmatpush1.bf16.msra.mxu0 0
    %591 = vmatprep.subr.bf16.mxu0 0
    %592 = vmatpush1.bf16.msra.mxu0 0
    %593 = vmatprep.subr.bf16.mxu0 0
    %594 = vmatpush1.bf16.msra.mxu0 0
    %595 = vmatprep.subr.bf16.mxu0 0
    %596 = vmatpush1.bf16.msra.mxu0 0
    %597 = vmatprep.subr.bf16.mxu0 0
    %598 = vmatpush1.bf16.msra.mxu0 0
    %599 = vmatprep.mubr.bf16.mxu0 0
    %600 = vmatmul.mubr.bf16.gmra.mrb[0].mxu0 %v562
    %v601 = vpop.f32.mrb[0].mxu0
    %v602 = vadd.f32 0.0, %v601
    %v603 = vpop.f32.mrb[0].mxu0
    %v604 = vpop.f32.mrb[0].mxu0
    %v605 = vpop.f32.mrb[0].mxu0
    %606 = vdwg.mxu0
    %v607 = vpack.c.bf16 %v602, %v556
    %v608 = vld [vmem:[#allocation7] sm:$0xf]
    %v609 = vld [vmem:[#allocation7 + $0x4] sm:$0xf]
    %v610 = vld [vmem:[#allocation7 + $0x8] sm:$0xf]
    %v611 = vld [vmem:[#allocation7 + $0xc] sm:$0xf]
    %v613 = vlaneseq
    %v614 = vshrl.u32 %v613, 7
    %v615 = vsub.s32 0, %v614
    %v616 = vrot.slane %v134, %v615
    %v622 = vunpack.c.l.b16 %v608
    %v623 = vunpack.c.l.b16 %v609
    %v624 = vunpack.c.l.b16 %v610
    %v625 = vunpack.c.l.b16 %v611
    %v626 = vpack.c.b16 %v623, %v622
    %v627 = vpack.c.b16 %v625, %v624
    %v631 = vsel %vm137, %v607, 0
    %633 = vmatprep.subr.bf16.mxu0 0
    %634 = vmatpush1.bf16.msra.mxu0 %v626
    %635 = vmatprep.subr.bf16.mxu0 0
    %636 = vmatpush1.bf16.msra.mxu0 %v627
    %637 = vmatprep.subr.bf16.mxu0 0
    %638 = vmatpush1.bf16.msra.mxu0 0
    %639 = vmatprep.subr.bf16.mxu0 0
    %640 = vmatpush1.bf16.msra.mxu0 0
    %641 = vmatprep.subr.bf16.mxu0 0
    %642 = vmatpush1.bf16.msra.mxu0 0
    %643 = vmatprep.subr.bf16.mxu0 0
    %644 = vmatpush1.bf16.msra.mxu0 0
    %645 = vmatprep.subr.bf16.mxu0 0
    %646 = vmatpush1.bf16.msra.mxu0 0
    %647 = vmatprep.subr.bf16.mxu0 0
    %648 = vmatpush1.bf16.msra.mxu0 0
    %649 = vmatprep.subr.bf16.mxu0 0
    %650 = vmatpush1.bf16.msra.mxu0 0
    %651 = vmatprep.subr.bf16.mxu0 0
    %652 = vmatpush1.bf16.msra.mxu0 0
    %653 = vmatprep.subr.bf16.mxu0 0
    %654 = vmatpush1.bf16.msra.mxu0 0
    %655 = vmatprep.subr.bf16.mxu0 0
    %656 = vmatpush1.bf16.msra.mxu0 0
    %657 = vmatprep.subr.bf16.mxu0 0
    %658 = vmatpush1.bf16.msra.mxu0 0
    %659 = vmatprep.subr.bf16.mxu0 0
    %660 = vmatpush1.bf16.msra.mxu0 0
    %661 = vmatprep.subr.bf16.mxu0 0
    %662 = vmatpush1.bf16.msra.mxu0 0
    %663 = vmatprep.subr.bf16.mxu0 0
    %664 = vmatpush1.bf16.msra.mxu0 0
    %665 = vmatprep.mubr.bf16.mxu0 0
    %666 = vmatmul.mubr.bf16.gmra.mrb[0].mxu0 %v631
    %v667 = vpop.f32.mrb[0].mxu0
    %v668 = vadd.f32 %v616, %v667
    %v669 = vpop.f32.mrb[0].mxu0
    %v670 = vpop.f32.mrb[0].mxu0
    %v671 = vadd.f32 %v616, %v670
    %v672 = vpop.f32.mrb[0].mxu0
    %673 = vdwg.mxu0
    %v674 = vadd.f32 %v126, %v668
    %v675 = vadd.f32 %v127, %v671
    %v676 = vsel %vm137, %v674, 0.0
    %677 = vadd.xlane.f32.xlu0 %v676
    %v678 = vpop.xlane.xlu0 %677
    %v679 = vsel %vm137, %v675, 0.0
    %680 = vadd.xlane.f32.xlu0 %v679
    %v681 = vpop.xlane.xlu0 %680
    %v682 = vmul.f32 %v678, %v144
    %v683 = vmul.f32 %v681, %v144
    %v684 = vsub.f32 %v674, %v682
    %v685 = vsub.f32 %v675, %v683
    %v686 = vmul.f32 %v684, %v684
    %v687 = vmul.f32 %v685, %v685
    %v688 = vsel %vm137, %v686, 0.0
    %689 = vadd.xlane.f32.xlu0 %v688
    %v690 = vpop.xlane.xlu0 %689
    %v691 = vsel %vm137, %v687, 0.0
    %692 = vadd.xlane.f32.xlu0 %v691
    %v693 = vpop.xlane.xlu0 %692
    %v694 = vmul.f32 %v690, 0.032258064
    %v695 = vmul.f32 %v693, 0.032258064
    %v696 = vrsqrt.pop %v694
    %v697 = vmul.f32 %v694, %v696
    %vm698 = vcmp.eq.f32.partialorder %v694, inf
    %v699 = vsel %vm698, %v694, %v697
    %vm700 = vcmp.eq.f32.partialorder %v694, 0.0
    %v701 = vand.u32 %v694, 2147483648
    %v702 = vsel %vm700, %v701, %v699
    %v703 = vrsqrt.pop %v695
    %v704 = vmul.f32 %v695, %v703
    %vm705 = vcmp.eq.f32.partialorder %v695, inf
    %v706 = vsel %vm705, %v695, %v704
    %vm707 = vcmp.eq.f32.partialorder %v695, 0.0
    %v708 = vand.u32 %v695, 2147483648
    %v709 = vsel %vm707, %v708, %v706
    %v711 = vlaneseq
    %v712 = vshrl.u32 %v711, 7
    %v713 = vsub.s32 0, %v712
    %v714 = vrot.slane %v130, %v713
    %v716 = vmul.f32 %v714, %v684
    %v717 = vmul.f32 %v714, %v685
    %v718 = vadd.f32 %v702, 1e-06
    %v719 = vadd.f32 %v709, 1e-06
    %v720 = vrcp.pop %v718
    %v721 = vmul.f32 %v716, %v720
    %v722 = vrcp.pop %v719
    %v723 = vmul.f32 %v717, %v722
    %v725 = vlaneseq
    %v726 = vshrl.u32 %v725, 7
    %v727 = vsub.s32 0, %v726
    %v728 = vrot.slane %v131, %v727
    %v730 = vadd.f32 %v721, %v728
    %v731 = vadd.f32 %v723, %v728
    %v732 = vpack.c.bf16 %v731, %v730
    %v733 = vld [vmem:[%s11] sm:$0xf]
    %v734 = vld [vmem:[%s11 + $0x4] sm:$0xf]
    %v735 = vld [vmem:[%s11 + $0x8] sm:$0xf]
    %v736 = vld [vmem:[%s11 + $0xc] sm:$0xf]
    %v738 = vlaneseq
    %v739 = vshrl.u32 %v738, 7
    %v740 = vsub.s32 0, %v739
    %v741 = vrot.slane %v135, %v740
    %v747 = vunpack.c.l.b16 %v733
    %v748 = vunpack.c.l.b16 %v734
    %v749 = vunpack.c.l.b16 %v735
    %v750 = vunpack.c.l.b16 %v736
    %v751 = vpack.c.b16 %v748, %v747
    %v752 = vpack.c.b16 %v750, %v749
    %v756 = vsel %vm137, %v732, 0
    %758 = vmatprep.subr.bf16.mxu0 0
    %759 = vmatpush1.bf16.msra.mxu0 %v751
    %760 = vmatprep.subr.bf16.mxu0 0
    %761 = vmatpush1.bf16.msra.mxu0 %v752
    %762 = vmatprep.subr.bf16.mxu0 0
    %763 = vmatpush1.bf16.msra.mxu0 0
    %764 = vmatprep.subr.bf16.mxu0 0
    %765 = vmatpush1.bf16.msra.mxu0 0
    %766 = vmatprep.subr.bf16.mxu0 0
    %767 = vmatpush1.bf16.msra.mxu0 0
    %768 = vmatprep.subr.bf16.mxu0 0
    %769 = vmatpush1.bf16.msra.mxu0 0
    %770 = vmatprep.subr.bf16.mxu0 0
    %771 = vmatpush1.bf16.msra.mxu0 0
    %772 = vmatprep.subr.bf16.mxu0 0
    %773 = vmatpush1.bf16.msra.mxu0 0
    %774 = vmatprep.subr.bf16.mxu0 0
    %775 = vmatpush1.bf16.msra.mxu0 0
    %776 = vmatprep.subr.bf16.mxu0 0
    %777 = vmatpush1.bf16.msra.mxu0 0
    %778 = vmatprep.subr.bf16.mxu0 0
    %779 = vmatpush1.bf16.msra.mxu0 0
    %780 = vmatprep.subr.bf16.mxu0 0
    %781 = vmatpush1.bf16.msra.mxu0 0
    %782 = vmatprep.subr.bf16.mxu0 0
    %783 = vmatpush1.bf16.msra.mxu0 0
    %784 = vmatprep.subr.bf16.mxu0 0
    %785 = vmatpush1.bf16.msra.mxu0 0
    %786 = vmatprep.subr.bf16.mxu0 0
    %787 = vmatpush1.bf16.msra.mxu0 0
    %788 = vmatprep.subr.bf16.mxu0 0
    %789 = vmatpush1.bf16.msra.mxu0 0
    %790 = vmatprep.mubr.bf16.mxu0 0
    %791 = vmatmul.mubr.bf16.gmra.mrb[0].mxu0 %v756
    %v792 = vpop.f32.mrb[0].mxu0
    %v793 = vadd.f32 %v741, %v792
    %v794 = vpop.f32.mrb[0].mxu0
    %v795 = vpop.f32.mrb[0].mxu0
    %v796 = vadd.f32 %v741, %v795
    %v797 = vpop.f32.mrb[0].mxu0
    %798 = vdwg.mxu0
    %v799 = vmax.f32 %v793, 0.0
    %v800 = vmax.f32 %v796, 0.0
    %v801 = vpack.c.bf16 %v800, %v799
    %v802 = vld [vmem:[%s13] sm:$0xf]
    %v803 = vld [vmem:[%s13 + $0x4] sm:$0xf]
    %v804 = vld [vmem:[%s13 + $0x8] sm:$0xf]
    %v805 = vld [vmem:[%s13 + $0xc] sm:$0xf]
    %v806 = vld [vmem:[%s13 + $0x10] sm:$0xf]
    %v807 = vld [vmem:[%s13 + $0x14] sm:$0xf]
    %v808 = vld [vmem:[%s13 + $0x18] sm:$0xf]
    %v809 = vld [vmem:[%s13 + $0x1c] sm:$0xf]
    %v811 = vlaneseq
    %v812 = vshrl.u32 %v811, 7
    %v813 = vsub.s32 0, %v812
    %v814 = vrot.slane %v136, %v813
    %v824 = vunpack.c.l.b16 %v802
    %v825 = vunpack.c.l.b16 %v803
    %v826 = vunpack.c.l.b16 %v804
    %v827 = vunpack.c.l.b16 %v805
    %v828 = vunpack.c.l.b16 %v806
    %v829 = vunpack.c.l.b16 %v807
    %v830 = vunpack.c.l.b16 %v808
    %v831 = vunpack.c.l.b16 %v809
    %v832 = vpack.c.b16 %v825, %v824
    %v833 = vpack.c.b16 %v827, %v826
    %v834 = vpack.c.b16 %v829, %v828
    %v835 = vpack.c.b16 %v831, %v830
    %vm840 = vcmask 523264
    %v842 = vsel %vm840, %v801, 0
    %844 = vmatprep.subr.bf16.mxu0 0
    %845 = vmatpush1.bf16.msra.mxu0 %v832
    %846 = vmatprep.subr.bf16.mxu0 0
    %847 = vmatpush1.bf16.msra.mxu0 %v833
    %848 = vmatprep.subr.bf16.mxu0 0
    %849 = vmatpush1.bf16.msra.mxu0 %v834
    %850 = vmatprep.subr.bf16.mxu0 0
    %851 = vmatpush1.bf16.msra.mxu0 %v835
    %852 = vmatprep.subr.bf16.mxu0 0
    %853 = vmatpush1.bf16.msra.mxu0 0
    %854 = vmatprep.subr.bf16.mxu0 0
    %855 = vmatpush1.bf16.msra.mxu0 0
    %856 = vmatprep.subr.bf16.mxu0 0
    %857 = vmatpush1.bf16.msra.mxu0 0
    %858 = vmatprep.subr.bf16.mxu0 0
    %859 = vmatpush1.bf16.msra.mxu0 0
    %860 = vmatprep.subr.bf16.mxu0 0
    %861 = vmatpush1.bf16.msra.mxu0 0
    %862 = vmatprep.subr.bf16.mxu0 0
    %863 = vmatpush1.bf16.msra.mxu0 0
    %864 = vmatprep.subr.bf16.mxu0 0
    %865 = vmatpush1.bf16.msra.mxu0 0
    %866 = vmatprep.subr.bf16.mxu0 0
    %867 = vmatpush1.bf16.msra.mxu0 0
    %868 = vmatprep.subr.bf16.mxu0 0
    %869 = vmatpush1.bf16.msra.mxu0 0
    %870 = vmatprep.subr.bf16.mxu0 0
    %871 = vmatpush1.bf16.msra.mxu0 0
    %872 = vmatprep.subr.bf16.mxu0 0
    %873 = vmatpush1.bf16.msra.mxu0 0
    %874 = vmatprep.subr.bf16.mxu0 0
    %875 = vmatpush1.bf16.msra.mxu0 0
    %876 = vmatprep.mubr.bf16.mxu0 0
    %877 = vmatmul.mubr.bf16.gmra.mrb[0].mxu0 %v842
    %v878 = vpop.f32.mrb[0].mxu0
    %v879 = vadd.f32 %v814, %v878
    %v880 = vpop.f32.mrb[0].mxu0
    %v881 = vpop.f32.mrb[0].mxu0
    %v882 = vadd.f32 %v814, %v881
    %v883 = vpop.f32.mrb[0].mxu0
    %884 = vdwg.mxu0
    %v885 = vadd.f32 %v674, %v879
    %v886 = vadd.f32 %v675, %v882
    %v887 = vsel %vm137, %v885, 0.0
    %888 = vadd.xlane.f32.xlu0 %v887
    %v889 = vpop.xlane.xlu0 %888
    %v890 = vsel %vm137, %v886, 0.0
    %891 = vadd.xlane.f32.xlu0 %v890
    %v892 = vpop.xlane.xlu0 %891
    %v893 = vmul.f32 %v889, %v144
    %v894 = vmul.f32 %v892, %v144
    %v895 = vsub.f32 %v885, %v893
    %v896 = vsub.f32 %v886, %v894
    %v897 = vmul.f32 %v895, %v895
    %v898 = vmul.f32 %v896, %v896
    %v899 = vsel %vm137, %v897, 0.0
    %900 = vadd.xlane.f32.xlu0 %v899
    %v901 = vpop.xlane.xlu0 %900
    %v902 = vsel %vm137, %v898, 0.0
    %903 = vadd.xlane.f32.xlu0 %v902
    %v904 = vpop.xlane.xlu0 %903
    %v905 = vmul.f32 %v901, 0.032258064
    %v906 = vmul.f32 %v904, 0.032258064
    %v907 = vrsqrt.pop %v905
    %v908 = vmul.f32 %v905, %v907
    %vm909 = vcmp.eq.f32.partialorder %v905, inf
    %v910 = vsel %vm909, %v905, %v908
    %vm911 = vcmp.eq.f32.partialorder %v905, 0.0
    %v912 = vand.u32 %v905, 2147483648
    %v913 = vsel %vm911, %v912, %v910
    %v914 = vrsqrt.pop %v906
    %v915 = vmul.f32 %v906, %v914
    %vm916 = vcmp.eq.f32.partialorder %v906, inf
    %v917 = vsel %vm916, %v906, %v915
    %vm918 = vcmp.eq.f32.partialorder %v906, 0.0
    %v919 = vand.u32 %v906, 2147483648
    %v920 = vsel %vm918, %v919, %v917
    %v922 = vlaneseq
    %v923 = vshrl.u32 %v922, 7
    %v924 = vsub.s32 0, %v923
    %v925 = vrot.slane %v132, %v924
    %v927 = vmul.f32 %v925, %v895
    %v928 = vmul.f32 %v925, %v896
    %v929 = vadd.f32 %v913, 1e-06
    %v930 = vadd.f32 %v920, 1e-06
    %v931 = vrcp.pop %v929
    %v932 = vmul.f32 %v927, %v931
    %v933 = vrcp.pop %v930
    %v934 = vmul.f32 %v928, %v933
    %v936 = vlaneseq
    %v937 = vshrl.u32 %v936, 7
    %v938 = vsub.s32 0, %v937
    %v939 = vrot.slane %v133, %v938
    %v941 = vadd.f32 %v932, %v939
    %v942 = vadd.f32 %v934, %v939
    %943 = vst.msk [vmem:[#allocation11] sm:$0xff] %vm137, %v941
    %944 = vst.msk [vmem:[#allocation11 + $0x8] sm:$0xff] %vm137, %v942
    // Predicated region
    $region98: #{tpu_custom_call.1} parent=1 // pred_check
      _
    $region99: #{tpu_custom_call.1} parent=1 // pred_check_branch
      %946 = sbr.rel (0) target = $region101
    $region100: #{tpu_custom_call.1} parent=1 // pred_region
      %s948 = ssub.s32 256, 256
      %949 = vsyncadd [#allocation4], %s948
      %s950 = sshll.u32 [#allocation11], 4
      %s951 = int_to_ptr.vmem [resolvable:$true] %s950
      %956 = dma.vmem_to_hbm [thread:$0]  %s951, 256, %s19, [#allocation4], 128, 128, 8
    $region101: #{tpu_custom_call.1} parent=1 // pred_fallthru
      _
    // Predicated region
    $region102: #{tpu_custom_call.1} parent=1 // pred_check
      _
    $region103: #{tpu_custom_call.1} parent=1 // pred_check_branch
      %958 = sbr.rel (0) target = $region105
    $region104: #{tpu_custom_call.1} parent=1 // pred_region
      %959 = dma.done [#allocation4], 256
    $region105: #{tpu_custom_call.1} parent=1 // pred_fallthru
      _
    %960 = vsyncpa [#allocation3], 1
    %961 = vsyncpa [#allocation6], 1
    %962 = vsyncpa [#allocation9], 1
    %963 = vsyncpa [#allocation4], 1

</llo_original>
